<compile_context>
chip_gen: v7x
topology: tpu7x:2x2x1
jax: 0.10.0
libtpu: 0.0.40
codegen_flags: <defaults>
</compile_context>

<pallas_src>
from functools import partial

import jax
import jax.numpy as jnp
from jax.experimental import pallas as pl
from jax.experimental.pallas import tpu as pltpu


# ----------------------------------------------------------------------------
# Kernel
# ----------------------------------------------------------------------------
def make_rnn_fc_kernel(num_layers):
    """Fused multi-layer RNN + FC kernel (fixed number of layers).

    Ref layout (positional):
      x_ref                               (T, Bp, Ip)        bf16  time-major input
      per layer l in [0, L):
        w_ih_ref                          (in_pad, Hp)       bf16
        w_rec_ref   l <  L-1:             (Hp, Hp)           bf16  (= W_hh)
                    l == L-1:             (T, Hp, Hp+Cp)     bf16  (= [W_hh | fc_w[t-1]])
        b_ref                             (1, Hp)            f32
      fc_b_ref                            (1, Cp)            f32
      out_ref                             (Bp, Cp)           f32
      xw_ref   (scratch)                  (T, Bp, Hp)        f32   hoisted XW staging
      act_ref  (scratch)                  (T, Bp, Hp)        bf16  inter-layer activations
    """

    def kernel(*refs):
        idx = 0
        x_ref = refs[idx]; idx += 1
        layer_refs = []
        for _ in range(num_layers):
            layer_refs.append((refs[idx], refs[idx + 1], refs[idx + 2]))
            idx += 3
        fc_b_ref = refs[idx]; idx += 1
        out_ref = refs[idx]; idx += 1
        xw_ref = refs[idx]; idx += 1
        act_ref = refs[idx]; idx += 1

        T, B, _ = x_ref.shape
        H = xw_ref.shape[-1]
        C = out_ref.shape[-1]
        UNROLL = T if T <= 16 else 8          # explicit integer unroll

        for layer in range(num_layers):
            w_ih_ref, w_rec_ref, b_ref = layer_refs[layer]
            is_last = layer == num_layers - 1

            # ---- hoisted input-to-hidden matmul over ALL timesteps (big-M) ----
            if layer == 0:
                src = x_ref[...]                      # (T, B, Ip) bf16
            else:
                src = act_ref[...]                    # (T, B, Hp) bf16
            in_f = src.shape[-1]
            xw = jnp.dot(src.reshape(T * B, in_f), w_ih_ref[...],
                         preferred_element_type=jnp.float32) + b_ref[...]
            xw_ref[...] = xw.reshape(T, B, H)

            h0 = jnp.zeros((B, H), jnp.bfloat16)      # hidden carry (1 vreg, bf16)

            if not is_last:
                w_hh = w_rec_ref[...]                 # loop-invariant, hoisted

                def step(t, h_prev, w_hh=w_hh):
                    pre = xw_ref[t] + jnp.dot(h_prev, w_hh,
                                              preferred_element_type=jnp.float32)
                    h = jnp.tanh(pre).astype(jnp.bfloat16)
                    act_ref[t] = h                    # feed next layer (bf16)
                    return h

                jax.lax.fori_loop(0, T, step, h0, unroll=UNROLL)
            else:
                acc0 = jnp.zeros((B, C), jnp.float32)  # fused-FC acc (vreg carry)

                def step(t, carry):
                    h_prev, acc = carry
                    # one 256-wide MXU push: h_{t-1} @ [W_hh | fc_w[t-1]]
                    # (the fc half is multiplied by h_{-1}=0 at t=0)
                    z = jnp.dot(h_prev, w_rec_ref[t],
                                preferred_element_type=jnp.float32)   # (B, H+C)
                    pre = xw_ref[t] + z[:, :H]
                    acc = acc + z[:, H:]
                    h = jnp.tanh(pre).astype(jnp.bfloat16)
                    return (h, acc)

                h_last, acc = jax.lax.fori_loop(0, T, step, (h0, acc0),
                                                unroll=UNROLL)
                # Final timestep's FC slice: fc_w[T-1] lives in the t=0 fc slot
                # of w_rec (that slot contributes 0 inside the loop).
                acc = acc + jnp.dot(h_last, w_rec_ref[0][:, H:],
                                    preferred_element_type=jnp.float32)
                out_ref[...] = acc + fc_b_ref[...]

    return kernel


# ----------------------------------------------------------------------------
# Parameter preparation (done ONCE, not per forward call)
# ----------------------------------------------------------------------------
def _round_up(x, m):
    return ((x + m - 1) // m) * m


def prepare_params(params, seq_len):
    """Pad / transpose / concatenate all weights once into kernel-ready arrays."""
    num_layers = len(params["rnn_layers"])
    I = params["rnn_layers"][0]["w_ih_t"].shape[0]
    H = params["rnn_layers"][0]["w_hh_t"].shape[0]
    C = params["fc_b"].shape[-1]
    T = seq_len

    I_pad = _round_up(I, 128)
    H_pad = _round_up(H, 128)
    C_pad = _round_up(C, 128)

    layers = []
    for li, layer in enumerate(params["rnn_layers"]):
        in_f = I if li == 0 else H
        in_pad = I_pad if li == 0 else H_pad
        w_ih = jnp.zeros((in_pad, H_pad), jnp.bfloat16).at[:in_f, :H].set(
            layer["w_ih_t"].astype(jnp.bfloat16))
        w_hh = jnp.zeros((H_pad, H_pad), jnp.bfloat16).at[:H, :H].set(
            layer["w_hh_t"].astype(jnp.bfloat16))
        b = jnp.zeros((1, H_pad), jnp.float32).at[:, :H].set(layer["bias"])

        if li == num_layers - 1:
            # Per-timestep FC slices, shifted by +1 so slot t holds fc_w[t-1];
            # slot 0 holds fc_w[T-1] (used by the post-loop epilogue, it is
            # multiplied by h_{-1}=0 inside the loop).
            fc_w = params["fc_w_t"].reshape(T, H, C).astype(jnp.bfloat16)
            fc_w_pad = jnp.zeros((T, H_pad, C_pad), jnp.bfloat16).at[
                :, :H, :C].set(fc_w)
            fc_shifted = jnp.roll(fc_w_pad, 1, axis=0)
            w_cat = jnp.concatenate(
                [jnp.broadcast_to(w_hh[None], (T, H_pad, H_pad)), fc_shifted],
                axis=-1)                               # (T, Hp, Hp+Cp)
            layers.append((w_ih, w_cat, b))
        else:
            layers.append((w_ih, w_hh, b))

    fc_b_pad = jnp.zeros((1, C_pad), jnp.float32).at[:, :C].set(params["fc_b"])
    return {"layers": layers, "fc_b": fc_b_pad}


# ----------------------------------------------------------------------------
# Forward wrapper (only x is padded/transposed per call)
# ----------------------------------------------------------------------------
def _full_spec(shape):
    nd = len(shape)
    return pl.BlockSpec(shape, lambda *_: (0,) * nd)


@partial(jax.jit, static_argnames=("num_classes",))
def rnn_forward(x, prepared, *, num_classes):
    """x: (batch, seq, input_size) -> (batch, num_classes)."""
    B, T, I = x.shape
    layers = prepared["layers"]
    fc_b = prepared["fc_b"]
    num_layers = len(layers)

    I_pad = layers[0][0].shape[0]
    H_pad = layers[0][2].shape[-1]
    C_pad = fc_b.shape[-1]
    B_pad = _round_up(max(B, 8), 8)

    # time-major, padded, bf16 (single transpose + pad + cast)
    x_tm = jnp.transpose(x, (1, 0, 2))
    x_pad = jnp.pad(x_tm, ((0, 0), (0, B_pad - B), (0, I_pad - I))
                    ).astype(jnp.bfloat16)

    args = [x_pad]
    for (w_ih, w_rec, b) in layers:
        args += [w_ih, w_rec, b]
    args.append(fc_b)

    out_pad = pl.pallas_call(
        make_rnn_fc_kernel(num_layers),
        out_shape=jax.ShapeDtypeStruct((B_pad, C_pad), jnp.float32),
        in_specs=[_full_spec(a.shape) for a in args],
        out_specs=_full_spec((B_pad, C_pad)),
        scratch_shapes=[
            pltpu.VMEM((T, B_pad, H_pad), jnp.float32),   # hoisted XW staging
            pltpu.VMEM((T, B_pad, H_pad), jnp.bfloat16),  # inter-layer activations
        ],
    )(*args)

    return out_pad[:B, :num_classes]


# ----------------------------------------------------------------------------
# Pure-JAX reference (f32) for a sanity check
# ----------------------------------------------------------------------------
def rnn_forward_ref(x, params):
    B, T, _ = x.shape
    h_seq = x.astype(jnp.float32)
    for layer in params["rnn_layers"]:
        H = layer["w_hh_t"].shape[0]
        h = jnp.zeros((B, H), jnp.float32)
        outs = []
        for t in range(T):
            h = jnp.tanh(h_seq[:, t, :] @ layer["w_ih_t"]
                         + h @ layer["w_hh_t"] + layer["bias"])
            outs.append(h)
        h_seq = jnp.stack(outs, axis=1)                # (B, T, H)
    flat = h_seq.reshape(B, -1)                        # (B, T*H)
    return flat @ params["fc_w_t"] + params["fc_b"]


# ----------------------------------------------------------------------------
# Deterministic parameter init (PyTorch-style U(-1/sqrt(H), 1/sqrt(H)))
# ----------------------------------------------------------------------------
def init_params(key, input_size, hidden_size, num_layers, num_classes, seq_len):
    params = {"rnn_layers": []}
    bound_rnn = 1.0 / jnp.sqrt(hidden_size)
    for layer in range(num_layers):
        in_feat = input_size if layer == 0 else hidden_size
        key, k1, k2, k3, k4 = jax.random.split(key, 5)
        w_ih = jax.random.uniform(k1, (hidden_size, in_feat), jnp.float32,
                                  -bound_rnn, bound_rnn)
        w_hh = jax.random.uniform(k2, (hidden_size, hidden_size), jnp.float32,
                                  -bound_rnn, bound_rnn)
        b_ih = jax.random.uniform(k3, (hidden_size,), jnp.float32,
                                  -bound_rnn, bound_rnn)
        b_hh = jax.random.uniform(k4, (hidden_size,), jnp.float32,
                                  -bound_rnn, bound_rnn)
        params["rnn_layers"].append({
            "w_ih_t": w_ih.T,                               # (in_feat, H)
            "w_hh_t": w_hh.T,                               # (H, H)
            "bias": (b_ih + b_hh).reshape(1, hidden_size),  # (1, H)
        })

    fc_in = hidden_size * seq_len
    bound_fc = 1.0 / jnp.sqrt(fc_in)
    key, k1, k2 = jax.random.split(key, 3)
    fc_w = jax.random.uniform(k1, (num_classes, fc_in), jnp.float32,
                              -bound_fc, bound_fc)
    fc_b = jax.random.uniform(k2, (num_classes,), jnp.float32,
                              -bound_fc, bound_fc)
    params["fc_w_t"] = fc_w.T                               # (T*H, C)
    params["fc_b"] = fc_b.reshape(1, num_classes)           # (1, C)
    return params


# ----------------------------------------------------------------------------
if __name__ == "__main__":
    batch, seq_len, input_size = 2, 8, 16
    hidden_size, num_layers, num_classes = 32, 2, 10

    key = jax.random.PRNGKey(0)
    key, xk = jax.random.split(key)
    x = jax.random.normal(xk, (batch, seq_len, input_size), jnp.float32)

    params = init_params(key, input_size, hidden_size, num_layers,
                         num_classes, seq_len)
    prepared = prepare_params(params, seq_len)   # padded weights, built once

    out = rnn_forward(x, prepared, num_classes=num_classes)
    jax.block_until_ready(out)
    assert out.shape == (batch, num_classes)

    # sanity check against the pure-JAX f32 reference (bf16 matmul tolerance)
    ref = rnn_forward_ref(x, params)
    assert jnp.allclose(out, ref, atol=1e-1, rtol=1e-1), (
        f"max abs diff {jnp.max(jnp.abs(out - ref))}")

    print("KERNEL_OK")
</pallas_src>

<mosaic_0001>
module attributes {stable_mosaic.version = 11 : i64} {
  func.func @kernel(%arg0: memref<8x8x128xbf16, #tpu.memory_space<vmem>>, %arg1: memref<128x128xbf16, #tpu.memory_space<vmem>>, %arg2: memref<128x128xbf16, #tpu.memory_space<vmem>>, %arg3: memref<1x128xf32, #tpu.memory_space<vmem>>, %arg4: memref<128x128xbf16, #tpu.memory_space<vmem>>, %arg5: memref<8x128x256xbf16, #tpu.memory_space<vmem>>, %arg6: memref<1x128xf32, #tpu.memory_space<vmem>>, %arg7: memref<1x128xf32, #tpu.memory_space<vmem>>, %arg8: memref<8x128xf32, #tpu.memory_space<vmem>>, %arg9: memref<8x8x128xf32, #tpu.memory_space<vmem>>, %arg10: memref<8x8x128xbf16, #tpu.memory_space<vmem>>) attributes {dimension_semantics = [], scalar_prefetch = 0 : i64, scratch_operands = 2 : i64, tpu.core_type = #tpu.core_type<tc>} {
    %c0 = arith.constant 0 : index
    %c0_0 = arith.constant 0 : index
    %c0_1 = arith.constant 0 : index
    %0 = vector.load %arg0[%c0, %c0_0, %c0_1] : memref<8x8x128xbf16, #tpu.memory_space<vmem>>, vector<8x8x128xbf16>
    %1 = vector.shape_cast %0 : vector<8x8x128xbf16> to vector<64x128xbf16>
    %c0_2 = arith.constant 0 : index
    %c0_3 = arith.constant 0 : index
    %2 = vector.load %arg1[%c0_2, %c0_3] : memref<128x128xbf16, #tpu.memory_space<vmem>>, vector<128x128xbf16>
    %cst = arith.constant dense<0.000000e+00> : vector<64x128xf32>
    %3 = tpu.matmul %1, %2, %cst {dimension_numbers = #tpu.dot_dimension_numbers<[1], [0], [0], [1], [0, 0, 1, 1], [], []>} : vector<64x128xbf16>, vector<128x128xbf16>, vector<64x128xf32> -> vector<64x128xf32>
    %c0_4 = arith.constant 0 : index
    %c0_5 = arith.constant 0 : index
    %4 = vector.load %arg3[%c0_4, %c0_5] : memref<1x128xf32, #tpu.memory_space<vmem>>, vector<1x128xf32>
    %5 = vector.broadcast %4 : vector<1x128xf32> to vector<64x128xf32>
    %6 = arith.addf %3, %5 : vector<64x128xf32>
    %7 = vector.shape_cast %6 : vector<64x128xf32> to vector<8x8x128xf32>
    %c0_6 = arith.constant 0 : index
    %c0_7 = arith.constant 0 : index
    %c0_8 = arith.constant 0 : index
    %8 = vector.load %arg9[%c0_6, %c0_7, %c0_8] : memref<8x8x128xf32, #tpu.memory_space<vmem>>, vector<8x8x128xf32>
    tpu.vector_store %arg9[%c0_6, %c0_7, %c0_8], %7 {strides = array<i32>} : memref<8x8x128xf32, #tpu.memory_space<vmem>>, vector<8x8x128xf32>,
    %cst_9 = arith.constant 0.000000e+00 : bf16
    %9 = vector.broadcast %cst_9 : bf16 to vector<8x128xbf16>
    %c0_10 = arith.constant 0 : index
    %c0_11 = arith.constant 0 : index
    %10 = vector.load %arg2[%c0_10, %c0_11] : memref<128x128xbf16, #tpu.memory_space<vmem>>, vector<128x128xbf16>
    %c0_i32 = arith.constant 0 : i32
    %11 = arith.index_cast %c0_i32 : i32 to index
    %c0_12 = arith.constant 0 : index
    %c0_13 = arith.constant 0 : index
    %12 = vector.load %arg9[%11, %c0_12, %c0_13] : memref<8x8x128xf32, #tpu.memory_space<vmem>>, vector<1x8x128xf32>
    %13 = vector.shape_cast %12 : vector<1x8x128xf32> to vector<8x128xf32>
    %cst_14 = arith.constant dense<0.000000e+00> : vector<8x128xf32>
    %14 = tpu.matmul %9, %10, %cst_14 {dimension_numbers = #tpu.dot_dimension_numbers<[1], [0], [0], [1], [0, 0, 1, 1], [], []>} : vector<8x128xbf16>, vector<128x128xbf16>, vector<8x128xf32> -> vector<8x128xf32>
    %15 = arith.addf %13, %14 : vector<8x128xf32>
    %16 = math.tanh %15 : vector<8x128xf32>
    %17 = arith.truncf %16 : vector<8x128xf32> to vector<8x128xbf16>
    %18 = arith.index_cast %c0_i32 : i32 to index
    %c0_15 = arith.constant 0 : index
    %c0_16 = arith.constant 0 : index
    %19 = vector.load %arg10[%18, %c0_15, %c0_16] : memref<8x8x128xbf16, #tpu.memory_space<vmem>>, vector<1x8x128xbf16>
    %20 = vector.shape_cast %19 : vector<1x8x128xbf16> to vector<8x128xbf16>
    %21 = vector.shape_cast %17 : vector<8x128xbf16> to vector<1x8x128xbf16>
    tpu.vector_store %arg10[%18, %c0_15, %c0_16], %21 {strides = array<i32>} : memref<8x8x128xbf16, #tpu.memory_space<vmem>>, vector<1x8x128xbf16>,
    %c1_i32 = arith.constant 1 : i32
    %22 = arith.index_cast %c1_i32 : i32 to index
    %c0_17 = arith.constant 0 : index
    %c0_18 = arith.constant 0 : index
    %23 = vector.load %arg9[%22, %c0_17, %c0_18] : memref<8x8x128xf32, #tpu.memory_space<vmem>>, vector<1x8x128xf32>
    %24 = vector.shape_cast %23 : vector<1x8x128xf32> to vector<8x128xf32>
    %cst_19 = arith.constant dense<0.000000e+00> : vector<8x128xf32>
    %25 = tpu.matmul %17, %10, %cst_19 {dimension_numbers = #tpu.dot_dimension_numbers<[1], [0], [0], [1], [0, 0, 1, 1], [], []>} : vector<8x128xbf16>, vector<128x128xbf16>, vector<8x128xf32> -> vector<8x128xf32>
    %26 = arith.addf %24, %25 : vector<8x128xf32>
    %27 = math.tanh %26 : vector<8x128xf32>
    %28 = arith.truncf %27 : vector<8x128xf32> to vector<8x128xbf16>
    %29 = arith.index_cast %c1_i32 : i32 to index
    %c0_20 = arith.constant 0 : index
    %c0_21 = arith.constant 0 : index
    %30 = vector.load %arg10[%29, %c0_20, %c0_21] : memref<8x8x128xbf16, #tpu.memory_space<vmem>>, vector<1x8x128xbf16>
    %31 = vector.shape_cast %30 : vector<1x8x128xbf16> to vector<8x128xbf16>
    %32 = vector.shape_cast %28 : vector<8x128xbf16> to vector<1x8x128xbf16>
    tpu.vector_store %arg10[%29, %c0_20, %c0_21], %32 {strides = array<i32>} : memref<8x8x128xbf16, #tpu.memory_space<vmem>>, vector<1x8x128xbf16>,
    %c2_i32 = arith.constant 2 : i32
    %33 = arith.index_cast %c2_i32 : i32 to index
    %c0_22 = arith.constant 0 : index
    %c0_23 = arith.constant 0 : index
    %34 = vector.load %arg9[%33, %c0_22, %c0_23] : memref<8x8x128xf32, #tpu.memory_space<vmem>>, vector<1x8x128xf32>
    %35 = vector.shape_cast %34 : vector<1x8x128xf32> to vector<8x128xf32>
    %cst_24 = arith.constant dense<0.000000e+00> : vector<8x128xf32>
    %36 = tpu.matmul %28, %10, %cst_24 {dimension_numbers = #tpu.dot_dimension_numbers<[1], [0], [0], [1], [0, 0, 1, 1], [], []>} : vector<8x128xbf16>, vector<128x128xbf16>, vector<8x128xf32> -> vector<8x128xf32>
    %37 = arith.addf %35, %36 : vector<8x128xf32>
    %38 = math.tanh %37 : vector<8x128xf32>
    %39 = arith.truncf %38 : vector<8x128xf32> to vector<8x128xbf16>
    %40 = arith.index_cast %c2_i32 : i32 to index
    %c0_25 = arith.constant 0 : index
    %c0_26 = arith.constant 0 : index
    %41 = vector.load %arg10[%40, %c0_25, %c0_26] : memref<8x8x128xbf16, #tpu.memory_space<vmem>>, vector<1x8x128xbf16>
    %42 = vector.shape_cast %41 : vector<1x8x128xbf16> to vector<8x128xbf16>
    %43 = vector.shape_cast %39 : vector<8x128xbf16> to vector<1x8x128xbf16>
    tpu.vector_store %arg10[%40, %c0_25, %c0_26], %43 {strides = array<i32>} : memref<8x8x128xbf16, #tpu.memory_space<vmem>>, vector<1x8x128xbf16>,
    %c3_i32 = arith.constant 3 : i32
    %44 = arith.index_cast %c3_i32 : i32 to index
    %c0_27 = arith.constant 0 : index
    %c0_28 = arith.constant 0 : index
    %45 = vector.load %arg9[%44, %c0_27, %c0_28] : memref<8x8x128xf32, #tpu.memory_space<vmem>>, vector<1x8x128xf32>
    %46 = vector.shape_cast %45 : vector<1x8x128xf32> to vector<8x128xf32>
    %cst_29 = arith.constant dense<0.000000e+00> : vector<8x128xf32>
    %47 = tpu.matmul %39, %10, %cst_29 {dimension_numbers = #tpu.dot_dimension_numbers<[1], [0], [0], [1], [0, 0, 1, 1], [], []>} : vector<8x128xbf16>, vector<128x128xbf16>, vector<8x128xf32> -> vector<8x128xf32>
    %48 = arith.addf %46, %47 : vector<8x128xf32>
    %49 = math.tanh %48 : vector<8x128xf32>
    %50 = arith.truncf %49 : vector<8x128xf32> to vector<8x128xbf16>
    %51 = arith.index_cast %c3_i32 : i32 to index
    %c0_30 = arith.constant 0 : index
    %c0_31 = arith.constant 0 : index
    %52 = vector.load %arg10[%51, %c0_30, %c0_31] : memref<8x8x128xbf16, #tpu.memory_space<vmem>>, vector<1x8x128xbf16>
    %53 = vector.shape_cast %52 : vector<1x8x128xbf16> to vector<8x128xbf16>
    %54 = vector.shape_cast %50 : vector<8x128xbf16> to vector<1x8x128xbf16>
    tpu.vector_store %arg10[%51, %c0_30, %c0_31], %54 {strides = array<i32>} : memref<8x8x128xbf16, #tpu.memory_space<vmem>>, vector<1x8x128xbf16>,
    %c4_i32 = arith.constant 4 : i32
    %55 = arith.index_cast %c4_i32 : i32 to index
    %c0_32 = arith.constant 0 : index
    %c0_33 = arith.constant 0 : index
    %56 = vector.load %arg9[%55, %c0_32, %c0_33] : memref<8x8x128xf32, #tpu.memory_space<vmem>>, vector<1x8x128xf32>
    %57 = vector.shape_cast %56 : vector<1x8x128xf32> to vector<8x128xf32>
    %cst_34 = arith.constant dense<0.000000e+00> : vector<8x128xf32>
    %58 = tpu.matmul %50, %10, %cst_34 {dimension_numbers = #tpu.dot_dimension_numbers<[1], [0], [0], [1], [0, 0, 1, 1], [], []>} : vector<8x128xbf16>, vector<128x128xbf16>, vector<8x128xf32> -> vector<8x128xf32>
    %59 = arith.addf %57, %58 : vector<8x128xf32>
    %60 = math.tanh %59 : vector<8x128xf32>
    %61 = arith.truncf %60 : vector<8x128xf32> to vector<8x128xbf16>
    %62 = arith.index_cast %c4_i32 : i32 to index
    %c0_35 = arith.constant 0 : index
    %c0_36 = arith.constant 0 : index
    %63 = vector.load %arg10[%62, %c0_35, %c0_36] : memref<8x8x128xbf16, #tpu.memory_space<vmem>>, vector<1x8x128xbf16>
    %64 = vector.shape_cast %63 : vector<1x8x128xbf16> to vector<8x128xbf16>
    %65 = vector.shape_cast %61 : vector<8x128xbf16> to vector<1x8x128xbf16>
    tpu.vector_store %arg10[%62, %c0_35, %c0_36], %65 {strides = array<i32>} : memref<8x8x128xbf16, #tpu.memory_space<vmem>>, vector<1x8x128xbf16>,
    %c5_i32 = arith.constant 5 : i32
    %66 = arith.index_cast %c5_i32 : i32 to index
    %c0_37 = arith.constant 0 : index
    %c0_38 = arith.constant 0 : index
    %67 = vector.load %arg9[%66, %c0_37, %c0_38] : memref<8x8x128xf32, #tpu.memory_space<vmem>>, vector<1x8x128xf32>
    %68 = vector.shape_cast %67 : vector<1x8x128xf32> to vector<8x128xf32>
    %cst_39 = arith.constant dense<0.000000e+00> : vector<8x128xf32>
    %69 = tpu.matmul %61, %10, %cst_39 {dimension_numbers = #tpu.dot_dimension_numbers<[1], [0], [0], [1], [0, 0, 1, 1], [], []>} : vector<8x128xbf16>, vector<128x128xbf16>, vector<8x128xf32> -> vector<8x128xf32>
    %70 = arith.addf %68, %69 : vector<8x128xf32>
    %71 = math.tanh %70 : vector<8x128xf32>
    %72 = arith.truncf %71 : vector<8x128xf32> to vector<8x128xbf16>
    %73 = arith.index_cast %c5_i32 : i32 to index
    %c0_40 = arith.constant 0 : index
    %c0_41 = arith.constant 0 : index
    %74 = vector.load %arg10[%73, %c0_40, %c0_41] : memref<8x8x128xbf16, #tpu.memory_space<vmem>>, vector<1x8x128xbf16>
    %75 = vector.shape_cast %74 : vector<1x8x128xbf16> to vector<8x128xbf16>
    %76 = vector.shape_cast %72 : vector<8x128xbf16> to vector<1x8x128xbf16>
    tpu.vector_store %arg10[%73, %c0_40, %c0_41], %76 {strides = array<i32>} : memref<8x8x128xbf16, #tpu.memory_space<vmem>>, vector<1x8x128xbf16>,
    %c6_i32 = arith.constant 6 : i32
    %77 = arith.index_cast %c6_i32 : i32 to index
    %c0_42 = arith.constant 0 : index
    %c0_43 = arith.constant 0 : index
    %78 = vector.load %arg9[%77, %c0_42, %c0_43] : memref<8x8x128xf32, #tpu.memory_space<vmem>>, vector<1x8x128xf32>
    %79 = vector.shape_cast %78 : vector<1x8x128xf32> to vector<8x128xf32>
    %cst_44 = arith.constant dense<0.000000e+00> : vector<8x128xf32>
    %80 = tpu.matmul %72, %10, %cst_44 {dimension_numbers = #tpu.dot_dimension_numbers<[1], [0], [0], [1], [0, 0, 1, 1], [], []>} : vector<8x128xbf16>, vector<128x128xbf16>, vector<8x128xf32> -> vector<8x128xf32>
    %81 = arith.addf %79, %80 : vector<8x128xf32>
    %82 = math.tanh %81 : vector<8x128xf32>
    %83 = arith.truncf %82 : vector<8x128xf32> to vector<8x128xbf16>
    %84 = arith.index_cast %c6_i32 : i32 to index
    %c0_45 = arith.constant 0 : index
    %c0_46 = arith.constant 0 : index
    %85 = vector.load %arg10[%84, %c0_45, %c0_46] : memref<8x8x128xbf16, #tpu.memory_space<vmem>>, vector<1x8x128xbf16>
    %86 = vector.shape_cast %85 : vector<1x8x128xbf16> to vector<8x128xbf16>
    %87 = vector.shape_cast %83 : vector<8x128xbf16> to vector<1x8x128xbf16>
    tpu.vector_store %arg10[%84, %c0_45, %c0_46], %87 {strides = array<i32>} : memref<8x8x128xbf16, #tpu.memory_space<vmem>>, vector<1x8x128xbf16>,
    %c7_i32 = arith.constant 7 : i32
    %88 = arith.index_cast %c7_i32 : i32 to index
    %c0_47 = arith.constant 0 : index
    %c0_48 = arith.constant 0 : index
    %89 = vector.load %arg9[%88, %c0_47, %c0_48] : memref<8x8x128xf32, #tpu.memory_space<vmem>>, vector<1x8x128xf32>
    %90 = vector.shape_cast %89 : vector<1x8x128xf32> to vector<8x128xf32>
    %cst_49 = arith.constant dense<0.000000e+00> : vector<8x128xf32>
    %91 = tpu.matmul %83, %10, %cst_49 {dimension_numbers = #tpu.dot_dimension_numbers<[1], [0], [0], [1], [0, 0, 1, 1], [], []>} : vector<8x128xbf16>, vector<128x128xbf16>, vector<8x128xf32> -> vector<8x128xf32>
    %92 = arith.addf %90, %91 : vector<8x128xf32>
    %93 = math.tanh %92 : vector<8x128xf32>
    %94 = arith.truncf %93 : vector<8x128xf32> to vector<8x128xbf16>
    %95 = arith.index_cast %c7_i32 : i32 to index
    %c0_50 = arith.constant 0 : index
    %c0_51 = arith.constant 0 : index
    %96 = vector.load %arg10[%95, %c0_50, %c0_51] : memref<8x8x128xbf16, #tpu.memory_space<vmem>>, vector<1x8x128xbf16>
    %97 = vector.shape_cast %96 : vector<1x8x128xbf16> to vector<8x128xbf16>
    %98 = vector.shape_cast %94 : vector<8x128xbf16> to vector<1x8x128xbf16>
    tpu.vector_store %arg10[%95, %c0_50, %c0_51], %98 {strides = array<i32>} : memref<8x8x128xbf16, #tpu.memory_space<vmem>>, vector<1x8x128xbf16>,
    %c8_i32 = arith.constant 8 : i32
    %c0_52 = arith.constant 0 : index
    %c0_53 = arith.constant 0 : index
    %c0_54 = arith.constant 0 : index
    %99 = vector.load %arg10[%c0_52, %c0_53, %c0_54] : memref<8x8x128xbf16, #tpu.memory_space<vmem>>, vector<8x8x128xbf16>
    %100 = vector.shape_cast %99 : vector<8x8x128xbf16> to vector<64x128xbf16>
    %c0_55 = arith.constant 0 : index
    %c0_56 = arith.constant 0 : index
    %101 = vector.load %arg4[%c0_55, %c0_56] : memref<128x128xbf16, #tpu.memory_space<vmem>>, vector<128x128xbf16>
    %cst_57 = arith.constant dense<0.000000e+00> : vector<64x128xf32>
    %102 = tpu.matmul %100, %101, %cst_57 {dimension_numbers = #tpu.dot_dimension_numbers<[1], [0], [0], [1], [0, 0, 1, 1], [], []>} : vector<64x128xbf16>, vector<128x128xbf16>, vector<64x128xf32> -> vector<64x128xf32>
    %c0_58 = arith.constant 0 : index
    %c0_59 = arith.constant 0 : index
    %103 = vector.load %arg6[%c0_58, %c0_59] : memref<1x128xf32, #tpu.memory_space<vmem>>, vector<1x128xf32>
    %104 = vector.broadcast %103 : vector<1x128xf32> to vector<64x128xf32>
    %105 = arith.addf %102, %104 : vector<64x128xf32>
    %106 = vector.shape_cast %105 : vector<64x128xf32> to vector<8x8x128xf32>
    %c0_60 = arith.constant 0 : index
    %c0_61 = arith.constant 0 : index
    %c0_62 = arith.constant 0 : index
    %107 = vector.load %arg9[%c0_60, %c0_61, %c0_62] : memref<8x8x128xf32, #tpu.memory_space<vmem>>, vector<8x8x128xf32>
    tpu.vector_store %arg9[%c0_60, %c0_61, %c0_62], %106 {strides = array<i32>} : memref<8x8x128xf32, #tpu.memory_space<vmem>>, vector<8x8x128xf32>,
    %cst_63 = arith.constant 0.000000e+00 : bf16
    %108 = vector.broadcast %cst_63 : bf16 to vector<8x128xbf16>
    %cst_64 = arith.constant 0.000000e+00 : f32
    %109 = vector.broadcast %cst_64 : f32 to vector<8x128xf32>
    %c0_i32_65 = arith.constant 0 : i32
    %110 = arith.index_cast %c0_i32_65 : i32 to index
    %c0_66 = arith.constant 0 : index
    %c0_67 = arith.constant 0 : index
    %111 = vector.load %arg5[%110, %c0_66, %c0_67] : memref<8x128x256xbf16, #tpu.memory_space<vmem>>, vector<1x128x256xbf16>
    %112 = vector.shape_cast %111 : vector<1x128x256xbf16> to vector<128x256xbf16>
    %cst_68 = arith.constant dense<0.000000e+00> : vector<8x256xf32>
    %113 = tpu.matmul %108, %112, %cst_68 {dimension_numbers = #tpu.dot_dimension_numbers<[1], [0], [0], [1], [0, 0, 1, 1], [], []>} : vector<8x128xbf16>, vector<128x256xbf16>, vector<8x256xf32> -> vector<8x256xf32>
    %114 = arith.index_cast %c0_i32_65 : i32 to index
    %c0_69 = arith.constant 0 : index
    %c0_70 = arith.constant 0 : index
    %115 = vector.load %arg9[%114, %c0_69, %c0_70] : memref<8x8x128xf32, #tpu.memory_space<vmem>>, vector<1x8x128xf32>
    %116 = vector.shape_cast %115 : vector<1x8x128xf32> to vector<8x128xf32>
    %117 = vector.extract_strided_slice %113 {offsets = [0, 0], sizes = [8, 128], strides = [1, 1]} : vector<8x256xf32> to vector<8x128xf32>
    %118 = arith.addf %116, %117 : vector<8x128xf32>
    %119 = vector.extract_strided_slice %113 {offsets = [0, 128], sizes = [8, 128], strides = [1, 1]} : vector<8x256xf32> to vector<8x128xf32>
    %120 = arith.addf %109, %119 : vector<8x128xf32>
    %121 = math.tanh %118 : vector<8x128xf32>
    %122 = arith.truncf %121 : vector<8x128xf32> to vector<8x128xbf16>
    %c1_i32_71 = arith.constant 1 : i32
    %123 = arith.index_cast %c1_i32_71 : i32 to index
    %c0_72 = arith.constant 0 : index
    %c0_73 = arith.constant 0 : index
    %124 = vector.load %arg5[%123, %c0_72, %c0_73] : memref<8x128x256xbf16, #tpu.memory_space<vmem>>, vector<1x128x256xbf16>
    %125 = vector.shape_cast %124 : vector<1x128x256xbf16> to vector<128x256xbf16>
    %cst_74 = arith.constant dense<0.000000e+00> : vector<8x256xf32>
    %126 = tpu.matmul %122, %125, %cst_74 {dimension_numbers = #tpu.dot_dimension_numbers<[1], [0], [0], [1], [0, 0, 1, 1], [], []>} : vector<8x128xbf16>, vector<128x256xbf16>, vector<8x256xf32> -> vector<8x256xf32>
    %127 = arith.index_cast %c1_i32_71 : i32 to index
    %c0_75 = arith.constant 0 : index
    %c0_76 = arith.constant 0 : index
    %128 = vector.load %arg9[%127, %c0_75, %c0_76] : memref<8x8x128xf32, #tpu.memory_space<vmem>>, vector<1x8x128xf32>
    %129 = vector.shape_cast %128 : vector<1x8x128xf32> to vector<8x128xf32>
    %130 = vector.extract_strided_slice %126 {offsets = [0, 0], sizes = [8, 128], strides = [1, 1]} : vector<8x256xf32> to vector<8x128xf32>
    %131 = arith.addf %129, %130 : vector<8x128xf32>
    %132 = vector.extract_strided_slice %126 {offsets = [0, 128], sizes = [8, 128], strides = [1, 1]} : vector<8x256xf32> to vector<8x128xf32>
    %133 = arith.addf %120, %132 : vector<8x128xf32>
    %134 = math.tanh %131 : vector<8x128xf32>
    %135 = arith.truncf %134 : vector<8x128xf32> to vector<8x128xbf16>
    %c2_i32_77 = arith.constant 2 : i32
    %136 = arith.index_cast %c2_i32_77 : i32 to index
    %c0_78 = arith.constant 0 : index
    %c0_79 = arith.constant 0 : index
    %137 = vector.load %arg5[%136, %c0_78, %c0_79] : memref<8x128x256xbf16, #tpu.memory_space<vmem>>, vector<1x128x256xbf16>
    %138 = vector.shape_cast %137 : vector<1x128x256xbf16> to vector<128x256xbf16>
    %cst_80 = arith.constant dense<0.000000e+00> : vector<8x256xf32>
    %139 = tpu.matmul %135, %138, %cst_80 {dimension_numbers = #tpu.dot_dimension_numbers<[1], [0], [0], [1], [0, 0, 1, 1], [], []>} : vector<8x128xbf16>, vector<128x256xbf16>, vector<8x256xf32> -> vector<8x256xf32>
    %140 = arith.index_cast %c2_i32_77 : i32 to index
    %c0_81 = arith.constant 0 : index
    %c0_82 = arith.constant 0 : index
    %141 = vector.load %arg9[%140, %c0_81, %c0_82] : memref<8x8x128xf32, #tpu.memory_space<vmem>>, vector<1x8x128xf32>
    %142 = vector.shape_cast %141 : vector<1x8x128xf32> to vector<8x128xf32>
    %143 = vector.extract_strided_slice %139 {offsets = [0, 0], sizes = [8, 128], strides = [1, 1]} : vector<8x256xf32> to vector<8x128xf32>
    %144 = arith.addf %142, %143 : vector<8x128xf32>
    %145 = vector.extract_strided_slice %139 {offsets = [0, 128], sizes = [8, 128], strides = [1, 1]} : vector<8x256xf32> to vector<8x128xf32>
    %146 = arith.addf %133, %145 : vector<8x128xf32>
    %147 = math.tanh %144 : vector<8x128xf32>
    %148 = arith.truncf %147 : vector<8x128xf32> to vector<8x128xbf16>
    %c3_i32_83 = arith.constant 3 : i32
    %149 = arith.index_cast %c3_i32_83 : i32 to index
    %c0_84 = arith.constant 0 : index
    %c0_85 = arith.constant 0 : index
    %150 = vector.load %arg5[%149, %c0_84, %c0_85] : memref<8x128x256xbf16, #tpu.memory_space<vmem>>, vector<1x128x256xbf16>
    %151 = vector.shape_cast %150 : vector<1x128x256xbf16> to vector<128x256xbf16>
    %cst_86 = arith.constant dense<0.000000e+00> : vector<8x256xf32>
    %152 = tpu.matmul %148, %151, %cst_86 {dimension_numbers = #tpu.dot_dimension_numbers<[1], [0], [0], [1], [0, 0, 1, 1], [], []>} : vector<8x128xbf16>, vector<128x256xbf16>, vector<8x256xf32> -> vector<8x256xf32>
    %153 = arith.index_cast %c3_i32_83 : i32 to index
    %c0_87 = arith.constant 0 : index
    %c0_88 = arith.constant 0 : index
    %154 = vector.load %arg9[%153, %c0_87, %c0_88] : memref<8x8x128xf32, #tpu.memory_space<vmem>>, vector<1x8x128xf32>
    %155 = vector.shape_cast %154 : vector<1x8x128xf32> to vector<8x128xf32>
    %156 = vector.extract_strided_slice %152 {offsets = [0, 0], sizes = [8, 128], strides = [1, 1]} : vector<8x256xf32> to vector<8x128xf32>
    %157 = arith.addf %155, %156 : vector<8x128xf32>
    %158 = vector.extract_strided_slice %152 {offsets = [0, 128], sizes = [8, 128], strides = [1, 1]} : vector<8x256xf32> to vector<8x128xf32>
    %159 = arith.addf %146, %158 : vector<8x128xf32>
    %160 = math.tanh %157 : vector<8x128xf32>
    %161 = arith.truncf %160 : vector<8x128xf32> to vector<8x128xbf16>
    %c4_i32_89 = arith.constant 4 : i32
    %162 = arith.index_cast %c4_i32_89 : i32 to index
    %c0_90 = arith.constant 0 : index
    %c0_91 = arith.constant 0 : index
    %163 = vector.load %arg5[%162, %c0_90, %c0_91] : memref<8x128x256xbf16, #tpu.memory_space<vmem>>, vector<1x128x256xbf16>
    %164 = vector.shape_cast %163 : vector<1x128x256xbf16> to vector<128x256xbf16>
    %cst_92 = arith.constant dense<0.000000e+00> : vector<8x256xf32>
    %165 = tpu.matmul %161, %164, %cst_92 {dimension_numbers = #tpu.dot_dimension_numbers<[1], [0], [0], [1], [0, 0, 1, 1], [], []>} : vector<8x128xbf16>, vector<128x256xbf16>, vector<8x256xf32> -> vector<8x256xf32>
    %166 = arith.index_cast %c4_i32_89 : i32 to index
    %c0_93 = arith.constant 0 : index
    %c0_94 = arith.constant 0 : index
    %167 = vector.load %arg9[%166, %c0_93, %c0_94] : memref<8x8x128xf32, #tpu.memory_space<vmem>>, vector<1x8x128xf32>
    %168 = vector.shape_cast %167 : vector<1x8x128xf32> to vector<8x128xf32>
    %169 = vector.extract_strided_slice %165 {offsets = [0, 0], sizes = [8, 128], strides = [1, 1]} : vector<8x256xf32> to vector<8x128xf32>
    %170 = arith.addf %168, %169 : vector<8x128xf32>
    %171 = vector.extract_strided_slice %165 {offsets = [0, 128], sizes = [8, 128], strides = [1, 1]} : vector<8x256xf32> to vector<8x128xf32>
    %172 = arith.addf %159, %171 : vector<8x128xf32>
    %173 = math.tanh %170 : vector<8x128xf32>
    %174 = arith.truncf %173 : vector<8x128xf32> to vector<8x128xbf16>
    %c5_i32_95 = arith.constant 5 : i32
    %175 = arith.index_cast %c5_i32_95 : i32 to index
    %c0_96 = arith.constant 0 : index
    %c0_97 = arith.constant 0 : index
    %176 = vector.load %arg5[%175, %c0_96, %c0_97] : memref<8x128x256xbf16, #tpu.memory_space<vmem>>, vector<1x128x256xbf16>
    %177 = vector.shape_cast %176 : vector<1x128x256xbf16> to vector<128x256xbf16>
    %cst_98 = arith.constant dense<0.000000e+00> : vector<8x256xf32>
    %178 = tpu.matmul %174, %177, %cst_98 {dimension_numbers = #tpu.dot_dimension_numbers<[1], [0], [0], [1], [0, 0, 1, 1], [], []>} : vector<8x128xbf16>, vector<128x256xbf16>, vector<8x256xf32> -> vector<8x256xf32>
    %179 = arith.index_cast %c5_i32_95 : i32 to index
    %c0_99 = arith.constant 0 : index
    %c0_100 = arith.constant 0 : index
    %180 = vector.load %arg9[%179, %c0_99, %c0_100] : memref<8x8x128xf32, #tpu.memory_space<vmem>>, vector<1x8x128xf32>
    %181 = vector.shape_cast %180 : vector<1x8x128xf32> to vector<8x128xf32>
    %182 = vector.extract_strided_slice %178 {offsets = [0, 0], sizes = [8, 128], strides = [1, 1]} : vector<8x256xf32> to vector<8x128xf32>
    %183 = arith.addf %181, %182 : vector<8x128xf32>
    %184 = vector.extract_strided_slice %178 {offsets = [0, 128], sizes = [8, 128], strides = [1, 1]} : vector<8x256xf32> to vector<8x128xf32>
    %185 = arith.addf %172, %184 : vector<8x128xf32>
    %186 = math.tanh %183 : vector<8x128xf32>
    %187 = arith.truncf %186 : vector<8x128xf32> to vector<8x128xbf16>
    %c6_i32_101 = arith.constant 6 : i32
    %188 = arith.index_cast %c6_i32_101 : i32 to index
    %c0_102 = arith.constant 0 : index
    %c0_103 = arith.constant 0 : index
    %189 = vector.load %arg5[%188, %c0_102, %c0_103] : memref<8x128x256xbf16, #tpu.memory_space<vmem>>, vector<1x128x256xbf16>
    %190 = vector.shape_cast %189 : vector<1x128x256xbf16> to vector<128x256xbf16>
    %cst_104 = arith.constant dense<0.000000e+00> : vector<8x256xf32>
    %191 = tpu.matmul %187, %190, %cst_104 {dimension_numbers = #tpu.dot_dimension_numbers<[1], [0], [0], [1], [0, 0, 1, 1], [], []>} : vector<8x128xbf16>, vector<128x256xbf16>, vector<8x256xf32> -> vector<8x256xf32>
    %192 = arith.index_cast %c6_i32_101 : i32 to index
    %c0_105 = arith.constant 0 : index
    %c0_106 = arith.constant 0 : index
    %193 = vector.load %arg9[%192, %c0_105, %c0_106] : memref<8x8x128xf32, #tpu.memory_space<vmem>>, vector<1x8x128xf32>
    %194 = vector.shape_cast %193 : vector<1x8x128xf32> to vector<8x128xf32>
    %195 = vector.extract_strided_slice %191 {offsets = [0, 0], sizes = [8, 128], strides = [1, 1]} : vector<8x256xf32> to vector<8x128xf32>
    %196 = arith.addf %194, %195 : vector<8x128xf32>
    %197 = vector.extract_strided_slice %191 {offsets = [0, 128], sizes = [8, 128], strides = [1, 1]} : vector<8x256xf32> to vector<8x128xf32>
    %198 = arith.addf %185, %197 : vector<8x128xf32>
    %199 = math.tanh %196 : vector<8x128xf32>
    %200 = arith.truncf %199 : vector<8x128xf32> to vector<8x128xbf16>
    %c7_i32_107 = arith.constant 7 : i32
    %201 = arith.index_cast %c7_i32_107 : i32 to index
    %c0_108 = arith.constant 0 : index
    %c0_109 = arith.constant 0 : index
    %202 = vector.load %arg5[%201, %c0_108, %c0_109] : memref<8x128x256xbf16, #tpu.memory_space<vmem>>, vector<1x128x256xbf16>
    %203 = vector.shape_cast %202 : vector<1x128x256xbf16> to vector<128x256xbf16>
    %cst_110 = arith.constant dense<0.000000e+00> : vector<8x256xf32>
    %204 = tpu.matmul %200, %203, %cst_110 {dimension_numbers = #tpu.dot_dimension_numbers<[1], [0], [0], [1], [0, 0, 1, 1], [], []>} : vector<8x128xbf16>, vector<128x256xbf16>, vector<8x256xf32> -> vector<8x256xf32>
    %205 = arith.index_cast %c7_i32_107 : i32 to index
    %c0_111 = arith.constant 0 : index
    %c0_112 = arith.constant 0 : index
    %206 = vector.load %arg9[%205, %c0_111, %c0_112] : memref<8x8x128xf32, #tpu.memory_space<vmem>>, vector<1x8x128xf32>
    %207 = vector.shape_cast %206 : vector<1x8x128xf32> to vector<8x128xf32>
    %208 = vector.extract_strided_slice %204 {offsets = [0, 0], sizes = [8, 128], strides = [1, 1]} : vector<8x256xf32> to vector<8x128xf32>
    %209 = arith.addf %207, %208 : vector<8x128xf32>
    %210 = vector.extract_strided_slice %204 {offsets = [0, 128], sizes = [8, 128], strides = [1, 1]} : vector<8x256xf32> to vector<8x128xf32>
    %211 = arith.addf %198, %210 : vector<8x128xf32>
    %212 = math.tanh %209 : vector<8x128xf32>
    %213 = arith.truncf %212 : vector<8x128xf32> to vector<8x128xbf16>
    %c8_i32_113 = arith.constant 8 : i32
    %c0_114 = arith.constant 0 : index
    %c0_115 = arith.constant 0 : index
    %c0_116 = arith.constant 0 : index
    %214 = vector.load %arg5[%c0_114, %c0_115, %c0_116] : memref<8x128x256xbf16, #tpu.memory_space<vmem>>, vector<1x128x256xbf16>
    %215 = vector.shape_cast %214 : vector<1x128x256xbf16> to vector<128x256xbf16>
    %216 = vector.extract_strided_slice %215 {offsets = [0, 128], sizes = [128, 128], strides = [1, 1]} : vector<128x256xbf16> to vector<128x128xbf16>
    %cst_117 = arith.constant dense<0.000000e+00> : vector<8x128xf32>
    %217 = tpu.matmul %213, %216, %cst_117 {dimension_numbers = #tpu.dot_dimension_numbers<[1], [0], [0], [1], [0, 0, 1, 1], [], []>} : vector<8x128xbf16>, vector<128x128xbf16>, vector<8x128xf32> -> vector<8x128xf32>
    %218 = arith.addf %211, %217 : vector<8x128xf32>
    %c0_118 = arith.constant 0 : index
    %c0_119 = arith.constant 0 : index
    %219 = vector.load %arg7[%c0_118, %c0_119] : memref<1x128xf32, #tpu.memory_space<vmem>>, vector<1x128xf32>
    %220 = vector.broadcast %219 : vector<1x128xf32> to vector<8x128xf32>
    %221 = arith.addf %218, %220 : vector<8x128xf32>
    %c0_120 = arith.constant 0 : index
    %c0_121 = arith.constant 0 : index
    %222 = vector.load %arg8[%c0_120, %c0_121] : memref<8x128xf32, #tpu.memory_space<vmem>>, vector<8x128xf32>
    tpu.vector_store %arg8[%c0_120, %c0_121], %221 {strides = array<i32>} : memref<8x128xf32, #tpu.memory_space<vmem>>, vector<8x128xf32>,
    return
  }
}

</mosaic_0001>

<llo_original>
// kernel: rnn_forward.1
$region0: #{rnn_forward.1}
  #allocation0 [shape = 'u32[]', space=smem, size = 0x4, offset = 0x4, fixed_abs, tag = 'smem constant byte address 0x4 - core index']
  #allocation1 [shape = 'u32[144,128]{1,0:T(1,128)}', space=vmem, size = 0x12000, scoped, tag = 'internal scratch']
  #allocation2 [shape = 'f32[8,8,128]{2,1,0:T(8,128)}', space=vmem, size = 0x8000, scoped, tag = 'scratch operand']
  #allocation3 [shape = 'bf16[8,8,128]{2,1,0:T(8,128)(2,1)}', space=vmem, size = 0x4000, scoped, tag = 'scratch operand']
  %s0 = inlined_call_operand.vmem [shape: bf16[8,8,128], index: 0, kind: input, shape index: {}]
  %s1 = inlined_call_operand.vmem [shape: bf16[128,128], index: 1, kind: input, shape index: {}]
  %s2 = inlined_call_operand.hbm [shape: bf16[128,128], index: 2, kind: input, shape index: {}]
  %s3 = inlined_call_operand.vmem [shape: f32[1,128], index: 3, kind: input, shape index: {}]
  %s4 = inlined_call_operand.hbm [shape: bf16[128,128], index: 4, kind: input, shape index: {}]
  %s5 = inlined_call_operand.hbm [shape: bf16[8,128,256], index: 5, kind: input, shape index: {}]
  %s6 = inlined_call_operand.vmem [shape: f32[1,128], index: 6, kind: input, shape index: {}]
  %s7 = inlined_call_operand.vmem [shape: f32[1,128], index: 7, kind: input, shape index: {}]
  %s8 = inlined_call_operand.vmem [shape: f32[8,128], index: 8, kind: output, shape index: {}]
  %s9 = sld [smem:[#allocation0]]
  $region54: #{rnn_forward.1} parent=0
    _
  %s11 = ssub.s32 1, %s9
  %s12 = scalar_select 0, %s11, %s9
  $region1: #{rnn_forward.1} parent=0
    #allocation4 [shape = 'u8[32768]{0}', space=vmem, size = 0x8000, scoped, tag = 'input window, operand 2, single buffered']
    #allocation5 [shape = 's32[1]{0}', space=sflag, size = 0x4, scoped, tag = 'scoped memory for rnn_forward.1']
    #allocation6 [shape = 'u8[32768]{0}', space=vmem, size = 0x8000, scoped, tag = 'input window, operand 4, single buffered']
    #allocation7 [shape = 's32[1]{0}', space=sflag, size = 0x4, scoped, tag = 'scoped memory for rnn_forward.1']
    #allocation8 [shape = 'u8[524288]{0}', space=vmem, size = 0x80000, scoped, tag = 'input window, operand 5, single buffered']
    %13 = vsyncpa [#allocation5], 0
    %14 = vsyncpa [#allocation7], 0
    // Predicated region
    $region2: #{rnn_forward.1} parent=1 // pred_check
      _
    $region3: #{rnn_forward.1} parent=1 // pred_check_branch
      %16 = sbr.rel (0) target = $region5
    $region4: #{rnn_forward.1} parent=1 // pred_region
      _
    $region5: #{rnn_forward.1} parent=1 // pred_fallthru
      _
    // Predicated region
    $region6: #{rnn_forward.1} parent=1 // pred_check
      _
    $region7: #{rnn_forward.1} parent=1 // pred_check_branch
      %18 = sbr.rel (0) target = $region9
    $region8: #{rnn_forward.1} parent=1 // pred_region
      _
    $region9: #{rnn_forward.1} parent=1 // pred_fallthru
      _
    // Predicated region
    $region10: #{rnn_forward.1} parent=1 // pred_check
      _
    $region11: #{rnn_forward.1} parent=1 // pred_check_branch
      %20 = sbr.rel (0) target = $region13
    $region12: #{rnn_forward.1} parent=1 // pred_region
      %s22 = ssub.s32 1024, 1024
      %23 = vsyncadd [#allocation5], %s22
      %s24 = sshll.u32 [#allocation4], 4
      %s25 = int_to_ptr.vmem [resolvable:$true] %s24
      %30 = dma.hbm_to_vmem [thread:$0]  %s2, 1024, %s25, [#allocation5], 64, 64, 4
    $region13: #{rnn_forward.1} parent=1 // pred_fallthru
      _
    // Predicated region
    $region14: #{rnn_forward.1} parent=1 // pred_check
      _
    $region15: #{rnn_forward.1} parent=1 // pred_check_branch
      %32 = sbr.rel (0) target = $region17
    $region16: #{rnn_forward.1} parent=1 // pred_region
      _
    $region17: #{rnn_forward.1} parent=1 // pred_fallthru
      _
    // Predicated region
    $region18: #{rnn_forward.1} parent=1 // pred_check
      _
    $region19: #{rnn_forward.1} parent=1 // pred_check_branch
      %34 = sbr.rel (0) target = $region21
    $region20: #{rnn_forward.1} parent=1 // pred_region
      %s36 = ssub.s32 1024, 1024
      %37 = vsyncadd [#allocation7], %s36
      %s38 = sshll.u32 [#allocation6], 4
      %s39 = int_to_ptr.vmem [resolvable:$true] %s38
      %44 = dma.hbm_to_vmem [thread:$0]  %s4, 1024, %s39, [#allocation7], 64, 64, 4
    $region21: #{rnn_forward.1} parent=1 // pred_fallthru
      _
    // Predicated region
    $region22: #{rnn_forward.1} parent=1 // pred_check
      _
    $region23: #{rnn_forward.1} parent=1 // pred_check_branch
      %46 = sbr.rel (0) target = $region25
    $region24: #{rnn_forward.1} parent=1 // pred_region
      %s48 = ssub.s32 16384, 16384
      %49 = vsyncadd [#allocation7], %s48
      %s50 = sshll.u32 [#allocation8], 4
      %s51 = int_to_ptr.vmem [resolvable:$true] %s50
      %56 = dma.hbm_to_vmem [thread:$0]  %s5, 16384, %s51, [#allocation7], 128, 128, 8
    $region25: #{rnn_forward.1} parent=1 // pred_fallthru
      _
    // Predicated region
    $region26: #{rnn_forward.1} parent=1 // pred_check
      _
    $region27: #{rnn_forward.1} parent=1 // pred_check_branch
      %58 = sbr.rel (0) target = $region29
    $region28: #{rnn_forward.1} parent=1 // pred_region
      _
    $region29: #{rnn_forward.1} parent=1 // pred_fallthru
      _
    // Predicated region
    $region30: #{rnn_forward.1} parent=1 // pred_check
      _
    $region31: #{rnn_forward.1} parent=1 // pred_check_branch
      %60 = sbr.rel (0) target = $region33
    $region32: #{rnn_forward.1} parent=1 // pred_region
      _
    $region33: #{rnn_forward.1} parent=1 // pred_fallthru
      _
    // Predicated region
    $region34: #{rnn_forward.1} parent=1 // pred_check
      _
    $region35: #{rnn_forward.1} parent=1 // pred_check_branch
      %62 = sbr.rel (0) target = $region37
    $region36: #{rnn_forward.1} parent=1 // pred_region
      %63 = dma.done [#allocation5], 1024
    $region37: #{rnn_forward.1} parent=1 // pred_fallthru
      _
    // Predicated region
    $region38: #{rnn_forward.1} parent=1 // pred_check
      _
    $region39: #{rnn_forward.1} parent=1 // pred_check_branch
      %65 = sbr.rel (0) target = $region41
    $region40: #{rnn_forward.1} parent=1 // pred_region
      %66 = dma.done [#allocation7], 1024
    $region41: #{rnn_forward.1} parent=1 // pred_fallthru
      _
    // Predicated region
    $region42: #{rnn_forward.1} parent=1 // pred_check
      _
    $region43: #{rnn_forward.1} parent=1 // pred_check_branch
      %68 = sbr.rel (0) target = $region45
    $region44: #{rnn_forward.1} parent=1 // pred_region
      %69 = dma.done [#allocation7], 16384
    $region45: #{rnn_forward.1} parent=1 // pred_fallthru
      _
    %v71 = vld [vmem:[%s0] sm:$0xf]
    %v72 = vld [vmem:[%s0 + $0x4] sm:$0xf]
    %v73 = vld [vmem:[%s0 + $0x8] sm:$0xf]
    %v74 = vld [vmem:[%s0 + $0xc] sm:$0xf]
    %v75 = vld [vmem:[%s0 + $0x10] sm:$0xf]
    %v76 = vld [vmem:[%s0 + $0x14] sm:$0xf]
    %v77 = vld [vmem:[%s0 + $0x18] sm:$0xf]
    %v78 = vld [vmem:[%s0 + $0x1c] sm:$0xf]
    %v79 = vld [vmem:[%s1] sm:$0xf]
    %v80 = vld [vmem:[%s1 + $0x4] sm:$0xf]
    %v81 = vld [vmem:[%s1 + $0x8] sm:$0xf]
    %v82 = vld [vmem:[%s1 + $0xc] sm:$0xf]
    %v83 = vld [vmem:[%s1 + $0x10] sm:$0xf]
    %v84 = vld [vmem:[%s1 + $0x14] sm:$0xf]
    %v85 = vld [vmem:[%s1 + $0x18] sm:$0xf]
    %v86 = vld [vmem:[%s1 + $0x1c] sm:$0xf]
    %v87 = vld [vmem:[%s1 + $0x20] sm:$0xf]
    %v88 = vld [vmem:[%s1 + $0x24] sm:$0xf]
    %v89 = vld [vmem:[%s1 + $0x28] sm:$0xf]
    %v90 = vld [vmem:[%s1 + $0x2c] sm:$0xf]
    %v91 = vld [vmem:[%s1 + $0x30] sm:$0xf]
    %v92 = vld [vmem:[%s1 + $0x34] sm:$0xf]
    %v93 = vld [vmem:[%s1 + $0x38] sm:$0xf]
    %v94 = vld [vmem:[%s1 + $0x3c] sm:$0xf]
    %v95 = vld [vmem:[%s3] sm:$0x1]
    %v97 = vlaneseq
    %v98 = vshrl.u32 %v97, 7
    %v99 = vsub.s32 0, %v98
    %v100 = vrot.slane %v95, %v99
    %v110 = vunpack.c.l.b16 %v71
    %v111 = vunpack.c.l.b16 %v72
    %v112 = vunpack.c.l.b16 %v73
    %v113 = vunpack.c.l.b16 %v74
    %v114 = vunpack.c.l.b16 %v75
    %v115 = vunpack.c.l.b16 %v76
    %v116 = vunpack.c.l.b16 %v77
    %v117 = vunpack.c.l.b16 %v78
    %v118 = vpack.c.b16 %v111, %v110
    %v119 = vpack.c.b16 %v113, %v112
    %v120 = vpack.c.b16 %v115, %v114
    %v121 = vpack.c.b16 %v117, %v116
    %v142 = vunpack.c.l.b16 %v79
    %v143 = vunpack.c.l.b16 %v80
    %v144 = vunpack.c.l.b16 %v81
    %v145 = vunpack.c.l.b16 %v82
    %v146 = vunpack.c.l.b16 %v83
    %v147 = vunpack.c.l.b16 %v84
    %v148 = vunpack.c.l.b16 %v85
    %v149 = vunpack.c.l.b16 %v86
    %v150 = vunpack.c.l.b16 %v87
    %v151 = vunpack.c.l.b16 %v88
    %v152 = vunpack.c.l.b16 %v89
    %v153 = vunpack.c.l.b16 %v90
    %v154 = vunpack.c.l.b16 %v91
    %v155 = vunpack.c.l.b16 %v92
    %v156 = vunpack.c.l.b16 %v93
    %v157 = vunpack.c.l.b16 %v94
    %v158 = vpack.c.b16 %v143, %v142
    %v159 = vpack.c.b16 %v145, %v144
    %v160 = vpack.c.b16 %v147, %v146
    %v161 = vpack.c.b16 %v149, %v148
    %v162 = vpack.c.b16 %v151, %v150
    %v163 = vpack.c.b16 %v153, %v152
    %v164 = vpack.c.b16 %v155, %v154
    %v165 = vpack.c.b16 %v157, %v156
    %174 = vmatprep.subr.bf16.mxu0 0
    %175 = vmatpush1.bf16.msra.mxu0 %v158
    %176 = vmatprep.subr.bf16.mxu0 0
    %177 = vmatpush1.bf16.msra.mxu0 %v159
    %178 = vmatprep.subr.bf16.mxu0 0
    %179 = vmatpush1.bf16.msra.mxu0 %v160
    %180 = vmatprep.subr.bf16.mxu0 0
    %181 = vmatpush1.bf16.msra.mxu0 %v161
    %182 = vmatprep.subr.bf16.mxu0 0
    %183 = vmatpush1.bf16.msra.mxu0 %v162
    %184 = vmatprep.subr.bf16.mxu0 0
    %185 = vmatpush1.bf16.msra.mxu0 %v163
    %186 = vmatprep.subr.bf16.mxu0 0
    %187 = vmatpush1.bf16.msra.mxu0 %v164
    %188 = vmatprep.subr.bf16.mxu0 0
    %189 = vmatpush1.bf16.msra.mxu0 %v165
    %190 = vmatprep.subr.bf16.mxu0 0
    %191 = vmatpush1.bf16.msra.mxu0 0
    %192 = vmatprep.subr.bf16.mxu0 0
    %193 = vmatpush1.bf16.msra.mxu0 0
    %194 = vmatprep.subr.bf16.mxu0 0
    %195 = vmatpush1.bf16.msra.mxu0 0
    %196 = vmatprep.subr.bf16.mxu0 0
    %197 = vmatpush1.bf16.msra.mxu0 0
    %198 = vmatprep.subr.bf16.mxu0 0
    %199 = vmatpush1.bf16.msra.mxu0 0
    %200 = vmatprep.subr.bf16.mxu0 0
    %201 = vmatpush1.bf16.msra.mxu0 0
    %202 = vmatprep.subr.bf16.mxu0 0
    %203 = vmatpush1.bf16.msra.mxu0 0
    %204 = vmatprep.subr.bf16.mxu0 0
    %205 = vmatpush1.bf16.msra.mxu0 0
    %206 = vmatprep.mubr.bf16.mxu0 0
    %207 = vmatmul.mubr.bf16.gmra.mrb[0].mxu0 %v118
    %v208 = vpop.f32.mrb[0].mxu0
    %v209 = vadd.f32 %v100, %v208
    %v210 = vpop.f32.mrb[0].mxu0
    %v211 = vpop.f32.mrb[0].mxu0
    %v212 = vadd.f32 %v100, %v211
    %v213 = vpop.f32.mrb[0].mxu0
    %214 = vmatprep.mubr.bf16.mxu0 0
    %215 = vmatmul.mubr.bf16.gmra.mrb[0].mxu0 %v119
    %v216 = vpop.f32.mrb[0].mxu0
    %v217 = vadd.f32 %v100, %v216
    %v218 = vpop.f32.mrb[0].mxu0
    %v219 = vpop.f32.mrb[0].mxu0
    %v220 = vadd.f32 %v100, %v219
    %v221 = vpop.f32.mrb[0].mxu0
    %222 = vmatprep.mubr.bf16.mxu0 0
    %223 = vmatmul.mubr.bf16.gmra.mrb[0].mxu0 %v120
    %v224 = vpop.f32.mrb[0].mxu0
    %v225 = vadd.f32 %v100, %v224
    %v226 = vpop.f32.mrb[0].mxu0
    %v227 = vpop.f32.mrb[0].mxu0
    %v228 = vadd.f32 %v100, %v227
    %v229 = vpop.f32.mrb[0].mxu0
    %230 = vmatprep.mubr.bf16.mxu0 0
    %231 = vmatmul.mubr.bf16.gmra.mrb[0].mxu0 %v121
    %v232 = vpop.f32.mrb[0].mxu0
    %v233 = vadd.f32 %v100, %v232
    %v234 = vpop.f32.mrb[0].mxu0
    %v235 = vpop.f32.mrb[0].mxu0
    %v236 = vadd.f32 %v100, %v235
    %v237 = vpop.f32.mrb[0].mxu0
    %238 = vdwg.mxu0
    %239 = vst [vmem:[#allocation2] sm:$0xff] %v209
    %240 = vst [vmem:[#allocation2 + $0x8] sm:$0xff] %v212
    %241 = vst [vmem:[#allocation2 + $0x10] sm:$0xff] %v217
    %242 = vst [vmem:[#allocation2 + $0x18] sm:$0xff] %v220
    %243 = vst [vmem:[#allocation2 + $0x20] sm:$0xff] %v225
    %244 = vst [vmem:[#allocation2 + $0x28] sm:$0xff] %v228
    %245 = vst [vmem:[#allocation2 + $0x30] sm:$0xff] %v233
    %246 = vst [vmem:[#allocation2 + $0x38] sm:$0xff] %v236
    %v247 = vld [vmem:[#allocation4] sm:$0xf]
    %v248 = vld [vmem:[#allocation4 + $0x4] sm:$0xf]
    %v249 = vld [vmem:[#allocation4 + $0x8] sm:$0xf]
    %v250 = vld [vmem:[#allocation4 + $0xc] sm:$0xf]
    %v251 = vld [vmem:[#allocation4 + $0x10] sm:$0xf]
    %v252 = vld [vmem:[#allocation4 + $0x14] sm:$0xf]
    %v253 = vld [vmem:[#allocation4 + $0x18] sm:$0xf]
    %v254 = vld [vmem:[#allocation4 + $0x1c] sm:$0xf]
    %v255 = vld [vmem:[#allocation4 + $0x20] sm:$0xf]
    %v256 = vld [vmem:[#allocation4 + $0x24] sm:$0xf]
    %v257 = vld [vmem:[#allocation4 + $0x28] sm:$0xf]
    %v258 = vld [vmem:[#allocation4 + $0x2c] sm:$0xf]
    %v259 = vld [vmem:[#allocation4 + $0x30] sm:$0xf]
    %v260 = vld [vmem:[#allocation4 + $0x34] sm:$0xf]
    %v261 = vld [vmem:[#allocation4 + $0x38] sm:$0xf]
    %v262 = vld [vmem:[#allocation4 + $0x3c] sm:$0xf]
    %v263 = vld [vmem:[#allocation2] sm:$0xff]
    %v280 = vunpack.c.l.b16 %v247
    %v281 = vunpack.c.l.b16 %v248
    %v282 = vunpack.c.l.b16 %v249
    %v283 = vunpack.c.l.b16 %v250
    %v284 = vunpack.c.l.b16 %v251
    %v285 = vunpack.c.l.b16 %v252
    %v286 = vunpack.c.l.b16 %v253
    %v287 = vunpack.c.l.b16 %v254
    %v288 = vunpack.c.l.b16 %v255
    %v289 = vunpack.c.l.b16 %v256
    %v290 = vunpack.c.l.b16 %v257
    %v291 = vunpack.c.l.b16 %v258
    %v292 = vunpack.c.l.b16 %v259
    %v293 = vunpack.c.l.b16 %v260
    %v294 = vunpack.c.l.b16 %v261
    %v295 = vunpack.c.l.b16 %v262
    %v296 = vpack.c.b16 %v281, %v280
    %v297 = vpack.c.b16 %v283, %v282
    %v298 = vpack.c.b16 %v285, %v284
    %v299 = vpack.c.b16 %v287, %v286
    %v300 = vpack.c.b16 %v289, %v288
    %v301 = vpack.c.b16 %v291, %v290
    %v302 = vpack.c.b16 %v293, %v292
    %v303 = vpack.c.b16 %v295, %v294
    %312 = vmatprep.subr.bf16.mxu0 0
    %313 = vmatpush1.bf16.msra.mxu0 %v296
    %314 = vmatprep.subr.bf16.mxu0 0
    %315 = vmatpush1.bf16.msra.mxu0 %v297
    %316 = vmatprep.subr.bf16.mxu0 0
    %317 = vmatpush1.bf16.msra.mxu0 %v298
    %318 = vmatprep.subr.bf16.mxu0 0
    %319 = vmatpush1.bf16.msra.mxu0 %v299
    %320 = vmatprep.subr.bf16.mxu0 0
    %321 = vmatpush1.bf16.msra.mxu0 %v300
    %322 = vmatprep.subr.bf16.mxu0 0
    %323 = vmatpush1.bf16.msra.mxu0 %v301
    %324 = vmatprep.subr.bf16.mxu0 0
    %325 = vmatpush1.bf16.msra.mxu0 %v302
    %326 = vmatprep.subr.bf16.mxu0 0
    %327 = vmatpush1.bf16.msra.mxu0 %v303
    %328 = vmatprep.subr.bf16.mxu0 0
    %329 = vmatpush1.bf16.msra.mxu0 0
    %330 = vmatprep.subr.bf16.mxu0 0
    %331 = vmatpush1.bf16.msra.mxu0 0
    %332 = vmatprep.subr.bf16.mxu0 0
    %333 = vmatpush1.bf16.msra.mxu0 0
    %334 = vmatprep.subr.bf16.mxu0 0
    %335 = vmatpush1.bf16.msra.mxu0 0
    %336 = vmatprep.subr.bf16.mxu0 0
    %337 = vmatpush1.bf16.msra.mxu0 0
    %338 = vmatprep.subr.bf16.mxu0 0
    %339 = vmatpush1.bf16.msra.mxu0 0
    %340 = vmatprep.subr.bf16.mxu0 0
    %341 = vmatpush1.bf16.msra.mxu0 0
    %342 = vmatprep.subr.bf16.mxu0 0
    %343 = vmatpush1.bf16.msra.mxu0 0
    %344 = vmatprep.mubr.bf16.mxu0 0
    %345 = vmatmul.mubr.bf16.gmra.mrb[0].mxu0 0
    %v346 = vpop.f32.mrb[0].mxu0
    %v347 = vadd.f32 0.0, %v346
    %v348 = vpop.f32.mrb[0].mxu0
    %v349 = vpop.f32.mrb[0].mxu0
    %v350 = vpop.f32.mrb[0].mxu0
    %351 = vdwg.mxu0
    %v352 = vadd.f32 %v263, %v347
    %v353 = vtanh.pop %v352
    %v354 = vpack.c.bf16 %v353, %v353
    %355 = vst [vmem:[#allocation3] sm:$0xf] %v354
    %s356 = scalar_lea.vmem [#allocation2], 8
    %v357 = vld [vmem:[%s356] sm:$0xff]
    %358 = vmatprep.subr.bf16.mxu0 0
    %359 = vmatpush1.bf16.msra.mxu0 %v296
    %360 = vmatprep.subr.bf16.mxu0 0
    %361 = vmatpush1.bf16.msra.mxu0 %v297
    %362 = vmatprep.subr.bf16.mxu0 0
    %363 = vmatpush1.bf16.msra.mxu0 %v298
    %364 = vmatprep.subr.bf16.mxu0 0
    %365 = vmatpush1.bf16.msra.mxu0 %v299
    %366 = vmatprep.subr.bf16.mxu0 0
    %367 = vmatpush1.bf16.msra.mxu0 %v300
    %368 = vmatprep.subr.bf16.mxu0 0
    %369 = vmatpush1.bf16.msra.mxu0 %v301
    %370 = vmatprep.subr.bf16.mxu0 0
    %371 = vmatpush1.bf16.msra.mxu0 %v302
    %372 = vmatprep.subr.bf16.mxu0 0
    %373 = vmatpush1.bf16.msra.mxu0 %v303
    %374 = vmatprep.subr.bf16.mxu0 0
    %375 = vmatpush1.bf16.msra.mxu0 0
    %376 = vmatprep.subr.bf16.mxu0 0
    %377 = vmatpush1.bf16.msra.mxu0 0
    %378 = vmatprep.subr.bf16.mxu0 0
    %379 = vmatpush1.bf16.msra.mxu0 0
    %380 = vmatprep.subr.bf16.mxu0 0
    %381 = vmatpush1.bf16.msra.mxu0 0
    %382 = vmatprep.subr.bf16.mxu0 0
    %383 = vmatpush1.bf16.msra.mxu0 0
    %384 = vmatprep.subr.bf16.mxu0 0
    %385 = vmatpush1.bf16.msra.mxu0 0
    %386 = vmatprep.subr.bf16.mxu0 0
    %387 = vmatpush1.bf16.msra.mxu0 0
    %388 = vmatprep.subr.bf16.mxu0 0
    %389 = vmatpush1.bf16.msra.mxu0 0
    %390 = vmatprep.mubr.bf16.mxu0 0
    %391 = vmatmul.mubr.bf16.gmra.mrb[0].mxu0 %v354
    %v392 = vpop.f32.mrb[0].mxu0
    %v393 = vadd.f32 0.0, %v392
    %v394 = vpop.f32.mrb[0].mxu0
    %v395 = vpop.f32.mrb[0].mxu0
    %v396 = vpop.f32.mrb[0].mxu0
    %397 = vdwg.mxu0
    %v398 = vadd.f32 %v357, %v393
    %v399 = vtanh.pop %v398
    %v400 = vpack.c.bf16 %v399, %v399
    %s401 = scalar_lea.vmem [#allocation3], 4
    %402 = vst [vmem:[%s401] sm:$0xf] %v400
    %s403 = scalar_lea.vmem [#allocation2], 16
    %v404 = vld [vmem:[%s403] sm:$0xff]
    %405 = vmatprep.subr.bf16.mxu0 0
    %406 = vmatpush1.bf16.msra.mxu0 %v296
    %407 = vmatprep.subr.bf16.mxu0 0
    %408 = vmatpush1.bf16.msra.mxu0 %v297
    %409 = vmatprep.subr.bf16.mxu0 0
    %410 = vmatpush1.bf16.msra.mxu0 %v298
    %411 = vmatprep.subr.bf16.mxu0 0
    %412 = vmatpush1.bf16.msra.mxu0 %v299
    %413 = vmatprep.subr.bf16.mxu0 0
    %414 = vmatpush1.bf16.msra.mxu0 %v300
    %415 = vmatprep.subr.bf16.mxu0 0
    %416 = vmatpush1.bf16.msra.mxu0 %v301
    %417 = vmatprep.subr.bf16.mxu0 0
    %418 = vmatpush1.bf16.msra.mxu0 %v302
    %419 = vmatprep.subr.bf16.mxu0 0
    %420 = vmatpush1.bf16.msra.mxu0 %v303
    %421 = vmatprep.subr.bf16.mxu0 0
    %422 = vmatpush1.bf16.msra.mxu0 0
    %423 = vmatprep.subr.bf16.mxu0 0
    %424 = vmatpush1.bf16.msra.mxu0 0
    %425 = vmatprep.subr.bf16.mxu0 0
    %426 = vmatpush1.bf16.msra.mxu0 0
    %427 = vmatprep.subr.bf16.mxu0 0
    %428 = vmatpush1.bf16.msra.mxu0 0
    %429 = vmatprep.subr.bf16.mxu0 0
    %430 = vmatpush1.bf16.msra.mxu0 0
    %431 = vmatprep.subr.bf16.mxu0 0
    %432 = vmatpush1.bf16.msra.mxu0 0
    %433 = vmatprep.subr.bf16.mxu0 0
    %434 = vmatpush1.bf16.msra.mxu0 0
    %435 = vmatprep.subr.bf16.mxu0 0
    %436 = vmatpush1.bf16.msra.mxu0 0
    %437 = vmatprep.mubr.bf16.mxu0 0
    %438 = vmatmul.mubr.bf16.gmra.mrb[0].mxu0 %v400
    %v439 = vpop.f32.mrb[0].mxu0
    %v440 = vadd.f32 0.0, %v439
    %v441 = vpop.f32.mrb[0].mxu0
    %v442 = vpop.f32.mrb[0].mxu0
    %v443 = vpop.f32.mrb[0].mxu0
    %444 = vdwg.mxu0
    %v445 = vadd.f32 %v404, %v440
    %v446 = vtanh.pop %v445
    %v447 = vpack.c.bf16 %v446, %v446
    %s448 = scalar_lea.vmem [#allocation3], 8
    %449 = vst [vmem:[%s448] sm:$0xf] %v447
    %s450 = scalar_lea.vmem [#allocation2], 24
    %v451 = vld [vmem:[%s450] sm:$0xff]
    %452 = vmatprep.subr.bf16.mxu0 0
    %453 = vmatpush1.bf16.msra.mxu0 %v296
    %454 = vmatprep.subr.bf16.mxu0 0
    %455 = vmatpush1.bf16.msra.mxu0 %v297
    %456 = vmatprep.subr.bf16.mxu0 0
    %457 = vmatpush1.bf16.msra.mxu0 %v298
    %458 = vmatprep.subr.bf16.mxu0 0
    %459 = vmatpush1.bf16.msra.mxu0 %v299
    %460 = vmatprep.subr.bf16.mxu0 0
    %461 = vmatpush1.bf16.msra.mxu0 %v300
    %462 = vmatprep.subr.bf16.mxu0 0
    %463 = vmatpush1.bf16.msra.mxu0 %v301
    %464 = vmatprep.subr.bf16.mxu0 0
    %465 = vmatpush1.bf16.msra.mxu0 %v302
    %466 = vmatprep.subr.bf16.mxu0 0
    %467 = vmatpush1.bf16.msra.mxu0 %v303
    %468 = vmatprep.subr.bf16.mxu0 0
    %469 = vmatpush1.bf16.msra.mxu0 0
    %470 = vmatprep.subr.bf16.mxu0 0
    %471 = vmatpush1.bf16.msra.mxu0 0
    %472 = vmatprep.subr.bf16.mxu0 0
    %473 = vmatpush1.bf16.msra.mxu0 0
    %474 = vmatprep.subr.bf16.mxu0 0
    %475 = vmatpush1.bf16.msra.mxu0 0
    %476 = vmatprep.subr.bf16.mxu0 0
    %477 = vmatpush1.bf16.msra.mxu0 0
    %478 = vmatprep.subr.bf16.mxu0 0
    %479 = vmatpush1.bf16.msra.mxu0 0
    %480 = vmatprep.subr.bf16.mxu0 0
    %481 = vmatpush1.bf16.msra.mxu0 0
    %482 = vmatprep.subr.bf16.mxu0 0
    %483 = vmatpush1.bf16.msra.mxu0 0
    %484 = vmatprep.mubr.bf16.mxu0 0
    %485 = vmatmul.mubr.bf16.gmra.mrb[0].mxu0 %v447
    %v486 = vpop.f32.mrb[0].mxu0
    %v487 = vadd.f32 0.0, %v486
    %v488 = vpop.f32.mrb[0].mxu0
    %v489 = vpop.f32.mrb[0].mxu0
    %v490 = vpop.f32.mrb[0].mxu0
    %491 = vdwg.mxu0
    %v492 = vadd.f32 %v451, %v487
    %v493 = vtanh.pop %v492
    %v494 = vpack.c.bf16 %v493, %v493
    %s495 = scalar_lea.vmem [#allocation3], 12
    %496 = vst [vmem:[%s495] sm:$0xf] %v494
    %s497 = scalar_lea.vmem [#allocation2], 32
    %v498 = vld [vmem:[%s497] sm:$0xff]
    %499 = vmatprep.subr.bf16.mxu0 0
    %500 = vmatpush1.bf16.msra.mxu0 %v296
    %501 = vmatprep.subr.bf16.mxu0 0
    %502 = vmatpush1.bf16.msra.mxu0 %v297
    %503 = vmatprep.subr.bf16.mxu0 0
    %504 = vmatpush1.bf16.msra.mxu0 %v298
    %505 = vmatprep.subr.bf16.mxu0 0
    %506 = vmatpush1.bf16.msra.mxu0 %v299
    %507 = vmatprep.subr.bf16.mxu0 0
    %508 = vmatpush1.bf16.msra.mxu0 %v300
    %509 = vmatprep.subr.bf16.mxu0 0
    %510 = vmatpush1.bf16.msra.mxu0 %v301
    %511 = vmatprep.subr.bf16.mxu0 0
    %512 = vmatpush1.bf16.msra.mxu0 %v302
    %513 = vmatprep.subr.bf16.mxu0 0
    %514 = vmatpush1.bf16.msra.mxu0 %v303
    %515 = vmatprep.subr.bf16.mxu0 0
    %516 = vmatpush1.bf16.msra.mxu0 0
    %517 = vmatprep.subr.bf16.mxu0 0
    %518 = vmatpush1.bf16.msra.mxu0 0
    %519 = vmatprep.subr.bf16.mxu0 0
    %520 = vmatpush1.bf16.msra.mxu0 0
    %521 = vmatprep.subr.bf16.mxu0 0
    %522 = vmatpush1.bf16.msra.mxu0 0
    %523 = vmatprep.subr.bf16.mxu0 0
    %524 = vmatpush1.bf16.msra.mxu0 0
    %525 = vmatprep.subr.bf16.mxu0 0
    %526 = vmatpush1.bf16.msra.mxu0 0
    %527 = vmatprep.subr.bf16.mxu0 0
    %528 = vmatpush1.bf16.msra.mxu0 0
    %529 = vmatprep.subr.bf16.mxu0 0
    %530 = vmatpush1.bf16.msra.mxu0 0
    %531 = vmatprep.mubr.bf16.mxu0 0
    %532 = vmatmul.mubr.bf16.gmra.mrb[0].mxu0 %v494
    %v533 = vpop.f32.mrb[0].mxu0
    %v534 = vadd.f32 0.0, %v533
    %v535 = vpop.f32.mrb[0].mxu0
    %v536 = vpop.f32.mrb[0].mxu0
    %v537 = vpop.f32.mrb[0].mxu0
    %538 = vdwg.mxu0
    %v539 = vadd.f32 %v498, %v534
    %v540 = vtanh.pop %v539
    %v541 = vpack.c.bf16 %v540, %v540
    %s542 = scalar_lea.vmem [#allocation3], 16
    %543 = vst [vmem:[%s542] sm:$0xf] %v541
    %s544 = scalar_lea.vmem [#allocation2], 40
    %v545 = vld [vmem:[%s544] sm:$0xff]
    %546 = vmatprep.subr.bf16.mxu0 0
    %547 = vmatpush1.bf16.msra.mxu0 %v296
    %548 = vmatprep.subr.bf16.mxu0 0
    %549 = vmatpush1.bf16.msra.mxu0 %v297
    %550 = vmatprep.subr.bf16.mxu0 0
    %551 = vmatpush1.bf16.msra.mxu0 %v298
    %552 = vmatprep.subr.bf16.mxu0 0
    %553 = vmatpush1.bf16.msra.mxu0 %v299
    %554 = vmatprep.subr.bf16.mxu0 0
    %555 = vmatpush1.bf16.msra.mxu0 %v300
    %556 = vmatprep.subr.bf16.mxu0 0
    %557 = vmatpush1.bf16.msra.mxu0 %v301
    %558 = vmatprep.subr.bf16.mxu0 0
    %559 = vmatpush1.bf16.msra.mxu0 %v302
    %560 = vmatprep.subr.bf16.mxu0 0
    %561 = vmatpush1.bf16.msra.mxu0 %v303
    %562 = vmatprep.subr.bf16.mxu0 0
    %563 = vmatpush1.bf16.msra.mxu0 0
    %564 = vmatprep.subr.bf16.mxu0 0
    %565 = vmatpush1.bf16.msra.mxu0 0
    %566 = vmatprep.subr.bf16.mxu0 0
    %567 = vmatpush1.bf16.msra.mxu0 0
    %568 = vmatprep.subr.bf16.mxu0 0
    %569 = vmatpush1.bf16.msra.mxu0 0
    %570 = vmatprep.subr.bf16.mxu0 0
    %571 = vmatpush1.bf16.msra.mxu0 0
    %572 = vmatprep.subr.bf16.mxu0 0
    %573 = vmatpush1.bf16.msra.mxu0 0
    %574 = vmatprep.subr.bf16.mxu0 0
    %575 = vmatpush1.bf16.msra.mxu0 0
    %576 = vmatprep.subr.bf16.mxu0 0
    %577 = vmatpush1.bf16.msra.mxu0 0
    %578 = vmatprep.mubr.bf16.mxu0 0
    %579 = vmatmul.mubr.bf16.gmra.mrb[0].mxu0 %v541
    %v580 = vpop.f32.mrb[0].mxu0
    %v581 = vadd.f32 0.0, %v580
    %v582 = vpop.f32.mrb[0].mxu0
    %v583 = vpop.f32.mrb[0].mxu0
    %v584 = vpop.f32.mrb[0].mxu0
    %585 = vdwg.mxu0
    %v586 = vadd.f32 %v545, %v581
    %v587 = vtanh.pop %v586
    %v588 = vpack.c.bf16 %v587, %v587
    %s589 = scalar_lea.vmem [#allocation3], 20
    %590 = vst [vmem:[%s589] sm:$0xf] %v588
    %s591 = scalar_lea.vmem [#allocation2], 48
    %v592 = vld [vmem:[%s591] sm:$0xff]
    %593 = vmatprep.subr.bf16.mxu0 0
    %594 = vmatpush1.bf16.msra.mxu0 %v296
    %595 = vmatprep.subr.bf16.mxu0 0
    %596 = vmatpush1.bf16.msra.mxu0 %v297
    %597 = vmatprep.subr.bf16.mxu0 0
    %598 = vmatpush1.bf16.msra.mxu0 %v298
    %599 = vmatprep.subr.bf16.mxu0 0
    %600 = vmatpush1.bf16.msra.mxu0 %v299
    %601 = vmatprep.subr.bf16.mxu0 0
    %602 = vmatpush1.bf16.msra.mxu0 %v300
    %603 = vmatprep.subr.bf16.mxu0 0
    %604 = vmatpush1.bf16.msra.mxu0 %v301
    %605 = vmatprep.subr.bf16.mxu0 0
    %606 = vmatpush1.bf16.msra.mxu0 %v302
    %607 = vmatprep.subr.bf16.mxu0 0
    %608 = vmatpush1.bf16.msra.mxu0 %v303
    %609 = vmatprep.subr.bf16.mxu0 0
    %610 = vmatpush1.bf16.msra.mxu0 0
    %611 = vmatprep.subr.bf16.mxu0 0
    %612 = vmatpush1.bf16.msra.mxu0 0
    %613 = vmatprep.subr.bf16.mxu0 0
    %614 = vmatpush1.bf16.msra.mxu0 0
    %615 = vmatprep.subr.bf16.mxu0 0
    %616 = vmatpush1.bf16.msra.mxu0 0
    %617 = vmatprep.subr.bf16.mxu0 0
    %618 = vmatpush1.bf16.msra.mxu0 0
    %619 = vmatprep.subr.bf16.mxu0 0
    %620 = vmatpush1.bf16.msra.mxu0 0
    %621 = vmatprep.subr.bf16.mxu0 0
    %622 = vmatpush1.bf16.msra.mxu0 0
    %623 = vmatprep.subr.bf16.mxu0 0
    %624 = vmatpush1.bf16.msra.mxu0 0
    %625 = vmatprep.mubr.bf16.mxu0 0
    %626 = vmatmul.mubr.bf16.gmra.mrb[0].mxu0 %v588
    %v627 = vpop.f32.mrb[0].mxu0
    %v628 = vadd.f32 0.0, %v627
    %v629 = vpop.f32.mrb[0].mxu0
    %v630 = vpop.f32.mrb[0].mxu0
    %v631 = vpop.f32.mrb[0].mxu0
    %632 = vdwg.mxu0
    %v633 = vadd.f32 %v592, %v628
    %v634 = vtanh.pop %v633
    %v635 = vpack.c.bf16 %v634, %v634
    %s636 = scalar_lea.vmem [#allocation3], 24
    %637 = vst [vmem:[%s636] sm:$0xf] %v635
    %s638 = scalar_lea.vmem [#allocation2], 56
    %v639 = vld [vmem:[%s638] sm:$0xff]
    %640 = vmatprep.subr.bf16.mxu0 0
    %641 = vmatpush1.bf16.msra.mxu0 %v296
    %642 = vmatprep.subr.bf16.mxu0 0
    %643 = vmatpush1.bf16.msra.mxu0 %v297
    %644 = vmatprep.subr.bf16.mxu0 0
    %645 = vmatpush1.bf16.msra.mxu0 %v298
    %646 = vmatprep.subr.bf16.mxu0 0
    %647 = vmatpush1.bf16.msra.mxu0 %v299
    %648 = vmatprep.subr.bf16.mxu0 0
    %649 = vmatpush1.bf16.msra.mxu0 %v300
    %650 = vmatprep.subr.bf16.mxu0 0
    %651 = vmatpush1.bf16.msra.mxu0 %v301
    %652 = vmatprep.subr.bf16.mxu0 0
    %653 = vmatpush1.bf16.msra.mxu0 %v302
    %654 = vmatprep.subr.bf16.mxu0 0
    %655 = vmatpush1.bf16.msra.mxu0 %v303
    %656 = vmatprep.subr.bf16.mxu0 0
    %657 = vmatpush1.bf16.msra.mxu0 0
    %658 = vmatprep.subr.bf16.mxu0 0
    %659 = vmatpush1.bf16.msra.mxu0 0
    %660 = vmatprep.subr.bf16.mxu0 0
    %661 = vmatpush1.bf16.msra.mxu0 0
    %662 = vmatprep.subr.bf16.mxu0 0
    %663 = vmatpush1.bf16.msra.mxu0 0
    %664 = vmatprep.subr.bf16.mxu0 0
    %665 = vmatpush1.bf16.msra.mxu0 0
    %666 = vmatprep.subr.bf16.mxu0 0
    %667 = vmatpush1.bf16.msra.mxu0 0
    %668 = vmatprep.subr.bf16.mxu0 0
    %669 = vmatpush1.bf16.msra.mxu0 0
    %670 = vmatprep.subr.bf16.mxu0 0
    %671 = vmatpush1.bf16.msra.mxu0 0
    %672 = vmatprep.mubr.bf16.mxu0 0
    %673 = vmatmul.mubr.bf16.gmra.mrb[0].mxu0 %v635
    %v674 = vpop.f32.mrb[0].mxu0
    %v675 = vadd.f32 0.0, %v674
    %v676 = vpop.f32.mrb[0].mxu0
    %v677 = vpop.f32.mrb[0].mxu0
    %v678 = vpop.f32.mrb[0].mxu0
    %679 = vdwg.mxu0
    %v680 = vadd.f32 %v639, %v675
    %v681 = vtanh.pop %v680
    %v682 = vpack.c.bf16 %v681, %v681
    %s683 = scalar_lea.vmem [#allocation3], 28
    %684 = vst [vmem:[%s683] sm:$0xf] %v682
    %v685 = vld [vmem:[#allocation3] sm:$0xf]
    %v686 = vld [vmem:[#allocation3 + $0x4] sm:$0xf]
    %v687 = vld [vmem:[#allocation3 + $0x8] sm:$0xf]
    %v688 = vld [vmem:[#allocation3 + $0xc] sm:$0xf]
    %v689 = vld [vmem:[#allocation3 + $0x10] sm:$0xf]
    %v690 = vld [vmem:[#allocation3 + $0x14] sm:$0xf]
    %v691 = vld [vmem:[#allocation3 + $0x18] sm:$0xf]
    %v692 = vld [vmem:[#allocation3 + $0x1c] sm:$0xf]
    %v693 = vld [vmem:[#allocation6] sm:$0xf]
    %v694 = vld [vmem:[#allocation6 + $0x4] sm:$0xf]
    %v695 = vld [vmem:[#allocation6 + $0x8] sm:$0xf]
    %v696 = vld [vmem:[#allocation6 + $0xc] sm:$0xf]
    %v697 = vld [vmem:[#allocation6 + $0x10] sm:$0xf]
    %v698 = vld [vmem:[#allocation6 + $0x14] sm:$0xf]
    %v699 = vld [vmem:[#allocation6 + $0x18] sm:$0xf]
    %v700 = vld [vmem:[#allocation6 + $0x1c] sm:$0xf]
    %v701 = vld [vmem:[#allocation6 + $0x20] sm:$0xf]
    %v702 = vld [vmem:[#allocation6 + $0x24] sm:$0xf]
    %v703 = vld [vmem:[#allocation6 + $0x28] sm:$0xf]
    %v704 = vld [vmem:[#allocation6 + $0x2c] sm:$0xf]
    %v705 = vld [vmem:[#allocation6 + $0x30] sm:$0xf]
    %v706 = vld [vmem:[#allocation6 + $0x34] sm:$0xf]
    %v707 = vld [vmem:[#allocation6 + $0x38] sm:$0xf]
    %v708 = vld [vmem:[#allocation6 + $0x3c] sm:$0xf]
    %v709 = vld [vmem:[%s6] sm:$0x1]
    %v711 = vlaneseq
    %v712 = vshrl.u32 %v711, 7
    %v713 = vsub.s32 0, %v712
    %v714 = vrot.slane %v709, %v713
    %v724 = vunpack.c.l.b16 %v685
    %v725 = vunpack.c.l.b16 %v686
    %v726 = vunpack.c.l.b16 %v687
    %v727 = vunpack.c.l.b16 %v688
    %v728 = vunpack.c.l.b16 %v689
    %v729 = vunpack.c.l.b16 %v690
    %v730 = vunpack.c.l.b16 %v691
    %v731 = vunpack.c.l.b16 %v692
    %v732 = vpack.c.b16 %v725, %v724
    %v733 = vpack.c.b16 %v727, %v726
    %v734 = vpack.c.b16 %v729, %v728
    %v735 = vpack.c.b16 %v731, %v730
    %v756 = vunpack.c.l.b16 %v693
    %v757 = vunpack.c.l.b16 %v694
    %v758 = vunpack.c.l.b16 %v695
    %v759 = vunpack.c.l.b16 %v696
    %v760 = vunpack.c.l.b16 %v697
    %v761 = vunpack.c.l.b16 %v698
    %v762 = vunpack.c.l.b16 %v699
    %v763 = vunpack.c.l.b16 %v700
    %v764 = vunpack.c.l.b16 %v701
    %v765 = vunpack.c.l.b16 %v702
    %v766 = vunpack.c.l.b16 %v703
    %v767 = vunpack.c.l.b16 %v704
    %v768 = vunpack.c.l.b16 %v705
    %v769 = vunpack.c.l.b16 %v706
    %v770 = vunpack.c.l.b16 %v707
    %v771 = vunpack.c.l.b16 %v708
    %v772 = vpack.c.b16 %v757, %v756
    %v773 = vpack.c.b16 %v759, %v758
    %v774 = vpack.c.b16 %v761, %v760
    %v775 = vpack.c.b16 %v763, %v762
    %v776 = vpack.c.b16 %v765, %v764
    %v777 = vpack.c.b16 %v767, %v766
    %v778 = vpack.c.b16 %v769, %v768
    %v779 = vpack.c.b16 %v771, %v770
    %788 = vmatprep.subr.bf16.mxu0 0
    %789 = vmatpush1.bf16.msra.mxu0 %v772
    %790 = vmatprep.subr.bf16.mxu0 0
    %791 = vmatpush1.bf16.msra.mxu0 %v773
    %792 = vmatprep.subr.bf16.mxu0 0
    %793 = vmatpush1.bf16.msra.mxu0 %v774
    %794 = vmatprep.subr.bf16.mxu0 0
    %795 = vmatpush1.bf16.msra.mxu0 %v775
    %796 = vmatprep.subr.bf16.mxu0 0
    %797 = vmatpush1.bf16.msra.mxu0 %v776
    %798 = vmatprep.subr.bf16.mxu0 0
    %799 = vmatpush1.bf16.msra.mxu0 %v777
    %800 = vmatprep.subr.bf16.mxu0 0
    %801 = vmatpush1.bf16.msra.mxu0 %v778
    %802 = vmatprep.subr.bf16.mxu0 0
    %803 = vmatpush1.bf16.msra.mxu0 %v779
    %804 = vmatprep.subr.bf16.mxu0 0
    %805 = vmatpush1.bf16.msra.mxu0 0
    %806 = vmatprep.subr.bf16.mxu0 0
    %807 = vmatpush1.bf16.msra.mxu0 0
    %808 = vmatprep.subr.bf16.mxu0 0
    %809 = vmatpush1.bf16.msra.mxu0 0
    %810 = vmatprep.subr.bf16.mxu0 0
    %811 = vmatpush1.bf16.msra.mxu0 0
    %812 = vmatprep.subr.bf16.mxu0 0
    %813 = vmatpush1.bf16.msra.mxu0 0
    %814 = vmatprep.subr.bf16.mxu0 0
    %815 = vmatpush1.bf16.msra.mxu0 0
    %816 = vmatprep.subr.bf16.mxu0 0
    %817 = vmatpush1.bf16.msra.mxu0 0
    %818 = vmatprep.subr.bf16.mxu0 0
    %819 = vmatpush1.bf16.msra.mxu0 0
    %820 = vmatprep.mubr.bf16.mxu0 0
    %821 = vmatmul.mubr.bf16.gmra.mrb[0].mxu0 %v732
    %v822 = vpop.f32.mrb[0].mxu0
    %v823 = vadd.f32 %v714, %v822
    %v824 = vpop.f32.mrb[0].mxu0
    %v825 = vpop.f32.mrb[0].mxu0
    %v826 = vadd.f32 %v714, %v825
    %v827 = vpop.f32.mrb[0].mxu0
    %828 = vmatprep.mubr.bf16.mxu0 0
    %829 = vmatmul.mubr.bf16.gmra.mrb[0].mxu0 %v733
    %v830 = vpop.f32.mrb[0].mxu0
    %v831 = vadd.f32 %v714, %v830
    %v832 = vpop.f32.mrb[0].mxu0
    %v833 = vpop.f32.mrb[0].mxu0
    %v834 = vadd.f32 %v714, %v833
    %v835 = vpop.f32.mrb[0].mxu0
    %836 = vmatprep.mubr.bf16.mxu0 0
    %837 = vmatmul.mubr.bf16.gmra.mrb[0].mxu0 %v734
    %v838 = vpop.f32.mrb[0].mxu0
    %v839 = vadd.f32 %v714, %v838
    %v840 = vpop.f32.mrb[0].mxu0
    %v841 = vpop.f32.mrb[0].mxu0
    %v842 = vadd.f32 %v714, %v841
    %v843 = vpop.f32.mrb[0].mxu0
    %844 = vmatprep.mubr.bf16.mxu0 0
    %845 = vmatmul.mubr.bf16.gmra.mrb[0].mxu0 %v735
    %v846 = vpop.f32.mrb[0].mxu0
    %v847 = vadd.f32 %v714, %v846
    %v848 = vpop.f32.mrb[0].mxu0
    %v849 = vpop.f32.mrb[0].mxu0
    %v850 = vadd.f32 %v714, %v849
    %v851 = vpop.f32.mrb[0].mxu0
    %852 = vdwg.mxu0
    %853 = vst [vmem:[#allocation2] sm:$0xff] %v823
    %854 = vst [vmem:[#allocation2 + $0x8] sm:$0xff] %v826
    %855 = vst [vmem:[#allocation2 + $0x10] sm:$0xff] %v831
    %856 = vst [vmem:[#allocation2 + $0x18] sm:$0xff] %v834
    %857 = vst [vmem:[#allocation2 + $0x20] sm:$0xff] %v839
    %858 = vst [vmem:[#allocation2 + $0x28] sm:$0xff] %v842
    %859 = vst [vmem:[#allocation2 + $0x30] sm:$0xff] %v847
    %860 = vst [vmem:[#allocation2 + $0x38] sm:$0xff] %v850
    %v861 = vld [vmem:[#allocation8] sm:$0xff]
    %v862 = vld [vmem:[#allocation8 + $0x8] sm:$0xff]
    %v863 = vld [vmem:[#allocation8 + $0x10] sm:$0xff]
    %v864 = vld [vmem:[#allocation8 + $0x18] sm:$0xff]
    %v865 = vld [vmem:[#allocation8 + $0x20] sm:$0xff]
    %v866 = vld [vmem:[#allocation8 + $0x28] sm:$0xff]
    %v867 = vld [vmem:[#allocation8 + $0x30] sm:$0xff]
    %v868 = vld [vmem:[#allocation8 + $0x38] sm:$0xff]
    %v869 = vld [vmem:[#allocation8 + $0x40] sm:$0xff]
    %v870 = vld [vmem:[#allocation8 + $0x48] sm:$0xff]
    %v871 = vld [vmem:[#allocation8 + $0x50] sm:$0xff]
    %v872 = vld [vmem:[#allocation8 + $0x58] sm:$0xff]
    %v873 = vld [vmem:[#allocation8 + $0x60] sm:$0xff]
    %v874 = vld [vmem:[#allocation8 + $0x68] sm:$0xff]
    %v875 = vld [vmem:[#allocation8 + $0x70] sm:$0xff]
    %v876 = vld [vmem:[#allocation8 + $0x78] sm:$0xff]
    %v893 = vunpack.c.l.b16 %v861
    %v894 = vunpack.c.h.b16 %v861
    %v895 = vunpack.c.l.b16 %v862
    %v896 = vunpack.c.h.b16 %v862
    %v897 = vunpack.c.l.b16 %v863
    %v898 = vunpack.c.h.b16 %v863
    %v899 = vunpack.c.l.b16 %v864
    %v900 = vunpack.c.h.b16 %v864
    %v901 = vunpack.c.l.b16 %v865
    %v902 = vunpack.c.h.b16 %v865
    %v903 = vunpack.c.l.b16 %v866
    %v904 = vunpack.c.h.b16 %v866
    %v905 = vunpack.c.l.b16 %v867
    %v906 = vunpack.c.h.b16 %v867
    %v907 = vunpack.c.l.b16 %v868
    %v908 = vunpack.c.h.b16 %v868
    %v909 = vunpack.c.l.b16 %v869
    %v910 = vunpack.c.h.b16 %v869
    %v911 = vunpack.c.l.b16 %v870
    %v912 = vunpack.c.h.b16 %v870
    %v913 = vunpack.c.l.b16 %v871
    %v914 = vunpack.c.h.b16 %v871
    %v915 = vunpack.c.l.b16 %v872
    %v916 = vunpack.c.h.b16 %v872
    %v917 = vunpack.c.l.b16 %v873
    %v918 = vunpack.c.h.b16 %v873
    %v919 = vunpack.c.l.b16 %v874
    %v920 = vunpack.c.h.b16 %v874
    %v921 = vunpack.c.l.b16 %v875
    %v922 = vunpack.c.h.b16 %v875
    %v923 = vunpack.c.l.b16 %v876
    %v924 = vunpack.c.h.b16 %v876
    %v925 = vpack.c.b16 %v895, %v893
    %v926 = vpack.c.b16 %v896, %v894
    %v927 = vpack.c.b16 %v899, %v897
    %v928 = vpack.c.b16 %v900, %v898
    %v929 = vpack.c.b16 %v903, %v901
    %v930 = vpack.c.b16 %v904, %v902
    %v931 = vpack.c.b16 %v907, %v905
    %v932 = vpack.c.b16 %v908, %v906
    %v933 = vpack.c.b16 %v911, %v909
    %v934 = vpack.c.b16 %v912, %v910
    %v935 = vpack.c.b16 %v915, %v913
    %v936 = vpack.c.b16 %v916, %v914
    %v937 = vpack.c.b16 %v919, %v917
    %v938 = vpack.c.b16 %v920, %v918
    %v939 = vpack.c.b16 %v923, %v921
    %v940 = vpack.c.b16 %v924, %v922
    %957 = vmatprep.subr.bf16.mxu0 %v926
    %958 = vmatpush1.bf16.msra.mxu0 %v925
    %959 = vmatprep.subr.bf16.mxu0 %v928
    %960 = vmatpush1.bf16.msra.mxu0 %v927
    %961 = vmatprep.subr.bf16.mxu0 %v930
    %962 = vmatpush1.bf16.msra.mxu0 %v929
    %963 = vmatprep.subr.bf16.mxu0 %v932
    %964 = vmatpush1.bf16.msra.mxu0 %v931
    %965 = vmatprep.subr.bf16.mxu0 %v934
    %966 = vmatpush1.bf16.msra.mxu0 %v933
    %967 = vmatprep.subr.bf16.mxu0 %v936
    %968 = vmatpush1.bf16.msra.mxu0 %v935
    %969 = vmatprep.subr.bf16.mxu0 %v938
    %970 = vmatpush1.bf16.msra.mxu0 %v937
    %971 = vmatprep.subr.bf16.mxu0 %v940
    %972 = vmatpush1.bf16.msra.mxu0 %v939
    %973 = vmatprep.subr.bf16.mxu0 0
    %974 = vmatpush1.bf16.msra.mxu0 0
    %975 = vmatprep.subr.bf16.mxu0 0
    %976 = vmatpush1.bf16.msra.mxu0 0
    %977 = vmatprep.subr.bf16.mxu0 0
    %978 = vmatpush1.bf16.msra.mxu0 0
    %979 = vmatprep.subr.bf16.mxu0 0
    %980 = vmatpush1.bf16.msra.mxu0 0
    %981 = vmatprep.subr.bf16.mxu0 0
    %982 = vmatpush1.bf16.msra.mxu0 0
    %983 = vmatprep.subr.bf16.mxu0 0
    %984 = vmatpush1.bf16.msra.mxu0 0
    %985 = vmatprep.subr.bf16.mxu0 0
    %986 = vmatpush1.bf16.msra.mxu0 0
    %987 = vmatprep.subr.bf16.mxu0 0
    %988 = vmatpush1.bf16.msra.mxu0 0
    %989 = vmatprep.mubr.bf16.mxu0 0
    %990 = vmatmul.mubr.bf16.gmra.mrb[0].mxu0 0
    %v991 = vpop.f32.mrb[0].mxu0
    %v992 = vadd.f32 0.0, %v991
    %v993 = vpop.f32.mrb[0].mxu0
    %v994 = vadd.f32 0.0, %v993
    %v995 = vpop.f32.mrb[0].mxu0
    %v996 = vpop.f32.mrb[0].mxu0
    %997 = vdwg.mxu0
    %v998 = vld [vmem:[#allocation2] sm:$0xff]
    %v999 = vadd.f32 %v998, %v992
    %v1000 = vadd.f32 %v994, 0.0
    %v1001 = vtanh.pop %v999
    %v1002 = vpack.c.bf16 %v1001, %v1001
    %s1003 = scalar_lea.vmem [#allocation8], 128
    %v1004 = vld [vmem:[%s1003] sm:$0xff]
    %v1005 = vld [vmem:[%s1003 + $0x8] sm:$0xff]
    %v1006 = vld [vmem:[%s1003 + $0x10] sm:$0xff]
    %v1007 = vld [vmem:[%s1003 + $0x18] sm:$0xff]
    %v1008 = vld [vmem:[%s1003 + $0x20] sm:$0xff]
    %v1009 = vld [vmem:[%s1003 + $0x28] sm:$0xff]
    %v1010 = vld [vmem:[%s1003 + $0x30] sm:$0xff]
    %v1011 = vld [vmem:[%s1003 + $0x38] sm:$0xff]
    %v1012 = vld [vmem:[%s1003 + $0x40] sm:$0xff]
    %v1013 = vld [vmem:[%s1003 + $0x48] sm:$0xff]
    %v1014 = vld [vmem:[%s1003 + $0x50] sm:$0xff]
    %v1015 = vld [vmem:[%s1003 + $0x58] sm:$0xff]
    %v1016 = vld [vmem:[%s1003 + $0x60] sm:$0xff]
    %v1017 = vld [vmem:[%s1003 + $0x68] sm:$0xff]
    %v1018 = vld [vmem:[%s1003 + $0x70] sm:$0xff]
    %v1019 = vld [vmem:[%s1003 + $0x78] sm:$0xff]
    %v1036 = vunpack.c.l.b16 %v1004
    %v1037 = vunpack.c.h.b16 %v1004
    %v1038 = vunpack.c.l.b16 %v1005
    %v1039 = vunpack.c.h.b16 %v1005
    %v1040 = vunpack.c.l.b16 %v1006
    %v1041 = vunpack.c.h.b16 %v1006
    %v1042 = vunpack.c.l.b16 %v1007
    %v1043 = vunpack.c.h.b16 %v1007
    %v1044 = vunpack.c.l.b16 %v1008
    %v1045 = vunpack.c.h.b16 %v1008
    %v1046 = vunpack.c.l.b16 %v1009
    %v1047 = vunpack.c.h.b16 %v1009
    %v1048 = vunpack.c.l.b16 %v1010
    %v1049 = vunpack.c.h.b16 %v1010
    %v1050 = vunpack.c.l.b16 %v1011
    %v1051 = vunpack.c.h.b16 %v1011
    %v1052 = vunpack.c.l.b16 %v1012
    %v1053 = vunpack.c.h.b16 %v1012
    %v1054 = vunpack.c.l.b16 %v1013
    %v1055 = vunpack.c.h.b16 %v1013
    %v1056 = vunpack.c.l.b16 %v1014
    %v1057 = vunpack.c.h.b16 %v1014
    %v1058 = vunpack.c.l.b16 %v1015
    %v1059 = vunpack.c.h.b16 %v1015
    %v1060 = vunpack.c.l.b16 %v1016
    %v1061 = vunpack.c.h.b16 %v1016
    %v1062 = vunpack.c.l.b16 %v1017
    %v1063 = vunpack.c.h.b16 %v1017
    %v1064 = vunpack.c.l.b16 %v1018
    %v1065 = vunpack.c.h.b16 %v1018
    %v1066 = vunpack.c.l.b16 %v1019
    %v1067 = vunpack.c.h.b16 %v1019
    %v1068 = vpack.c.b16 %v1038, %v1036
    %v1069 = vpack.c.b16 %v1039, %v1037
    %v1070 = vpack.c.b16 %v1042, %v1040
    %v1071 = vpack.c.b16 %v1043, %v1041
    %v1072 = vpack.c.b16 %v1046, %v1044
    %v1073 = vpack.c.b16 %v1047, %v1045
    %v1074 = vpack.c.b16 %v1050, %v1048
    %v1075 = vpack.c.b16 %v1051, %v1049
    %v1076 = vpack.c.b16 %v1054, %v1052
    %v1077 = vpack.c.b16 %v1055, %v1053
    %v1078 = vpack.c.b16 %v1058, %v1056
    %v1079 = vpack.c.b16 %v1059, %v1057
    %v1080 = vpack.c.b16 %v1062, %v1060
    %v1081 = vpack.c.b16 %v1063, %v1061
    %v1082 = vpack.c.b16 %v1066, %v1064
    %v1083 = vpack.c.b16 %v1067, %v1065
    %1100 = vmatprep.subr.bf16.mxu0 %v1069
    %1101 = vmatpush1.bf16.msra.mxu0 %v1068
    %1102 = vmatprep.subr.bf16.mxu0 %v1071
    %1103 = vmatpush1.bf16.msra.mxu0 %v1070
    %1104 = vmatprep.subr.bf16.mxu0 %v1073
    %1105 = vmatpush1.bf16.msra.mxu0 %v1072
    %1106 = vmatprep.subr.bf16.mxu0 %v1075
    %1107 = vmatpush1.bf16.msra.mxu0 %v1074
    %1108 = vmatprep.subr.bf16.mxu0 %v1077
    %1109 = vmatpush1.bf16.msra.mxu0 %v1076
    %1110 = vmatprep.subr.bf16.mxu0 %v1079
    %1111 = vmatpush1.bf16.msra.mxu0 %v1078
    %1112 = vmatprep.subr.bf16.mxu0 %v1081
    %1113 = vmatpush1.bf16.msra.mxu0 %v1080
    %1114 = vmatprep.subr.bf16.mxu0 %v1083
    %1115 = vmatpush1.bf16.msra.mxu0 %v1082
    %1116 = vmatprep.subr.bf16.mxu0 0
    %1117 = vmatpush1.bf16.msra.mxu0 0
    %1118 = vmatprep.subr.bf16.mxu0 0
    %1119 = vmatpush1.bf16.msra.mxu0 0
    %1120 = vmatprep.subr.bf16.mxu0 0
    %1121 = vmatpush1.bf16.msra.mxu0 0
    %1122 = vmatprep.subr.bf16.mxu0 0
    %1123 = vmatpush1.bf16.msra.mxu0 0
    %1124 = vmatprep.subr.bf16.mxu0 0
    %1125 = vmatpush1.bf16.msra.mxu0 0
    %1126 = vmatprep.subr.bf16.mxu0 0
    %1127 = vmatpush1.bf16.msra.mxu0 0
    %1128 = vmatprep.subr.bf16.mxu0 0
    %1129 = vmatpush1.bf16.msra.mxu0 0
    %1130 = vmatprep.subr.bf16.mxu0 0
    %1131 = vmatpush1.bf16.msra.mxu0 0
    %1132 = vmatprep.mubr.bf16.mxu0 0
    %1133 = vmatmul.mubr.bf16.gmra.mrb[0].mxu0 %v1002
    %v1134 = vpop.f32.mrb[0].mxu0
    %v1135 = vadd.f32 0.0, %v1134
    %v1136 = vpop.f32.mrb[0].mxu0
    %v1137 = vadd.f32 0.0, %v1136
    %v1138 = vpop.f32.mrb[0].mxu0
    %v1139 = vpop.f32.mrb[0].mxu0
    %1140 = vdwg.mxu0
    %v1141 = vld [vmem:[%s356] sm:$0xff]
    %v1142 = vadd.f32 %v1141, %v1135
    %v1143 = vadd.f32 %v1000, %v1137
    %v1144 = vtanh.pop %v1142
    %v1145 = vpack.c.bf16 %v1144, %v1144
    %s1146 = scalar_lea.vmem [#allocation8], 256
    %v1147 = vld [vmem:[%s1146] sm:$0xff]
    %v1148 = vld [vmem:[%s1146 + $0x8] sm:$0xff]
    %v1149 = vld [vmem:[%s1146 + $0x10] sm:$0xff]
    %v1150 = vld [vmem:[%s1146 + $0x18] sm:$0xff]
    %v1151 = vld [vmem:[%s1146 + $0x20] sm:$0xff]
    %v1152 = vld [vmem:[%s1146 + $0x28] sm:$0xff]
    %v1153 = vld [vmem:[%s1146 + $0x30] sm:$0xff]
    %v1154 = vld [vmem:[%s1146 + $0x38] sm:$0xff]
    %v1155 = vld [vmem:[%s1146 + $0x40] sm:$0xff]
    %v1156 = vld [vmem:[%s1146 + $0x48] sm:$0xff]
    %v1157 = vld [vmem:[%s1146 + $0x50] sm:$0xff]
    %v1158 = vld [vmem:[%s1146 + $0x58] sm:$0xff]
    %v1159 = vld [vmem:[%s1146 + $0x60] sm:$0xff]
    %v1160 = vld [vmem:[%s1146 + $0x68] sm:$0xff]
    %v1161 = vld [vmem:[%s1146 + $0x70] sm:$0xff]
    %v1162 = vld [vmem:[%s1146 + $0x78] sm:$0xff]
    %v1179 = vunpack.c.l.b16 %v1147
    %v1180 = vunpack.c.h.b16 %v1147
    %v1181 = vunpack.c.l.b16 %v1148
    %v1182 = vunpack.c.h.b16 %v1148
    %v1183 = vunpack.c.l.b16 %v1149
    %v1184 = vunpack.c.h.b16 %v1149
    %v1185 = vunpack.c.l.b16 %v1150
    %v1186 = vunpack.c.h.b16 %v1150
    %v1187 = vunpack.c.l.b16 %v1151
    %v1188 = vunpack.c.h.b16 %v1151
    %v1189 = vunpack.c.l.b16 %v1152
    %v1190 = vunpack.c.h.b16 %v1152
    %v1191 = vunpack.c.l.b16 %v1153
    %v1192 = vunpack.c.h.b16 %v1153
    %v1193 = vunpack.c.l.b16 %v1154
    %v1194 = vunpack.c.h.b16 %v1154
    %v1195 = vunpack.c.l.b16 %v1155
    %v1196 = vunpack.c.h.b16 %v1155
    %v1197 = vunpack.c.l.b16 %v1156
    %v1198 = vunpack.c.h.b16 %v1156
    %v1199 = vunpack.c.l.b16 %v1157
    %v1200 = vunpack.c.h.b16 %v1157
    %v1201 = vunpack.c.l.b16 %v1158
    %v1202 = vunpack.c.h.b16 %v1158
    %v1203 = vunpack.c.l.b16 %v1159
    %v1204 = vunpack.c.h.b16 %v1159
    %v1205 = vunpack.c.l.b16 %v1160
    %v1206 = vunpack.c.h.b16 %v1160
    %v1207 = vunpack.c.l.b16 %v1161
    %v1208 = vunpack.c.h.b16 %v1161
    %v1209 = vunpack.c.l.b16 %v1162
    %v1210 = vunpack.c.h.b16 %v1162
    %v1211 = vpack.c.b16 %v1181, %v1179
    %v1212 = vpack.c.b16 %v1182, %v1180
    %v1213 = vpack.c.b16 %v1185, %v1183
    %v1214 = vpack.c.b16 %v1186, %v1184
    %v1215 = vpack.c.b16 %v1189, %v1187
    %v1216 = vpack.c.b16 %v1190, %v1188
    %v1217 = vpack.c.b16 %v1193, %v1191
    %v1218 = vpack.c.b16 %v1194, %v1192
    %v1219 = vpack.c.b16 %v1197, %v1195
    %v1220 = vpack.c.b16 %v1198, %v1196
    %v1221 = vpack.c.b16 %v1201, %v1199
    %v1222 = vpack.c.b16 %v1202, %v1200
    %v1223 = vpack.c.b16 %v1205, %v1203
    %v1224 = vpack.c.b16 %v1206, %v1204
    %v1225 = vpack.c.b16 %v1209, %v1207
    %v1226 = vpack.c.b16 %v1210, %v1208
    %1243 = vmatprep.subr.bf16.mxu0 %v1212
    %1244 = vmatpush1.bf16.msra.mxu0 %v1211
    %1245 = vmatprep.subr.bf16.mxu0 %v1214
    %1246 = vmatpush1.bf16.msra.mxu0 %v1213
    %1247 = vmatprep.subr.bf16.mxu0 %v1216
    %1248 = vmatpush1.bf16.msra.mxu0 %v1215
    %1249 = vmatprep.subr.bf16.mxu0 %v1218
    %1250 = vmatpush1.bf16.msra.mxu0 %v1217
    %1251 = vmatprep.subr.bf16.mxu0 %v1220
    %1252 = vmatpush1.bf16.msra.mxu0 %v1219
    %1253 = vmatprep.subr.bf16.mxu0 %v1222
    %1254 = vmatpush1.bf16.msra.mxu0 %v1221
    %1255 = vmatprep.subr.bf16.mxu0 %v1224
    %1256 = vmatpush1.bf16.msra.mxu0 %v1223
    %1257 = vmatprep.subr.bf16.mxu0 %v1226
    %1258 = vmatpush1.bf16.msra.mxu0 %v1225
    %1259 = vmatprep.subr.bf16.mxu0 0
    %1260 = vmatpush1.bf16.msra.mxu0 0
    %1261 = vmatprep.subr.bf16.mxu0 0
    %1262 = vmatpush1.bf16.msra.mxu0 0
    %1263 = vmatprep.subr.bf16.mxu0 0
    %1264 = vmatpush1.bf16.msra.mxu0 0
    %1265 = vmatprep.subr.bf16.mxu0 0
    %1266 = vmatpush1.bf16.msra.mxu0 0
    %1267 = vmatprep.subr.bf16.mxu0 0
    %1268 = vmatpush1.bf16.msra.mxu0 0
    %1269 = vmatprep.subr.bf16.mxu0 0
    %1270 = vmatpush1.bf16.msra.mxu0 0
    %1271 = vmatprep.subr.bf16.mxu0 0
    %1272 = vmatpush1.bf16.msra.mxu0 0
    %1273 = vmatprep.subr.bf16.mxu0 0
    %1274 = vmatpush1.bf16.msra.mxu0 0
    %1275 = vmatprep.mubr.bf16.mxu0 0
    %1276 = vmatmul.mubr.bf16.gmra.mrb[0].mxu0 %v1145
    %v1277 = vpop.f32.mrb[0].mxu0
    %v1278 = vadd.f32 0.0, %v1277
    %v1279 = vpop.f32.mrb[0].mxu0
    %v1280 = vadd.f32 0.0, %v1279
    %v1281 = vpop.f32.mrb[0].mxu0
    %v1282 = vpop.f32.mrb[0].mxu0
    %1283 = vdwg.mxu0
    %v1284 = vld [vmem:[%s403] sm:$0xff]
    %v1285 = vadd.f32 %v1284, %v1278
    %v1286 = vadd.f32 %v1143, %v1280
    %v1287 = vtanh.pop %v1285
    %v1288 = vpack.c.bf16 %v1287, %v1287
    %s1289 = scalar_lea.vmem [#allocation8], 384
    %v1290 = vld [vmem:[%s1289] sm:$0xff]
    %v1291 = vld [vmem:[%s1289 + $0x8] sm:$0xff]
    %v1292 = vld [vmem:[%s1289 + $0x10] sm:$0xff]
    %v1293 = vld [vmem:[%s1289 + $0x18] sm:$0xff]
    %v1294 = vld [vmem:[%s1289 + $0x20] sm:$0xff]
    %v1295 = vld [vmem:[%s1289 + $0x28] sm:$0xff]
    %v1296 = vld [vmem:[%s1289 + $0x30] sm:$0xff]
    %v1297 = vld [vmem:[%s1289 + $0x38] sm:$0xff]
    %v1298 = vld [vmem:[%s1289 + $0x40] sm:$0xff]
    %v1299 = vld [vmem:[%s1289 + $0x48] sm:$0xff]
    %v1300 = vld [vmem:[%s1289 + $0x50] sm:$0xff]
    %v1301 = vld [vmem:[%s1289 + $0x58] sm:$0xff]
    %v1302 = vld [vmem:[%s1289 + $0x60] sm:$0xff]
    %v1303 = vld [vmem:[%s1289 + $0x68] sm:$0xff]
    %v1304 = vld [vmem:[%s1289 + $0x70] sm:$0xff]
    %v1305 = vld [vmem:[%s1289 + $0x78] sm:$0xff]
    %v1322 = vunpack.c.l.b16 %v1290
    %v1323 = vunpack.c.h.b16 %v1290
    %v1324 = vunpack.c.l.b16 %v1291
    %v1325 = vunpack.c.h.b16 %v1291
    %v1326 = vunpack.c.l.b16 %v1292
    %v1327 = vunpack.c.h.b16 %v1292
    %v1328 = vunpack.c.l.b16 %v1293
    %v1329 = vunpack.c.h.b16 %v1293
    %v1330 = vunpack.c.l.b16 %v1294
    %v1331 = vunpack.c.h.b16 %v1294
    %v1332 = vunpack.c.l.b16 %v1295
    %v1333 = vunpack.c.h.b16 %v1295
    %v1334 = vunpack.c.l.b16 %v1296
    %v1335 = vunpack.c.h.b16 %v1296
    %v1336 = vunpack.c.l.b16 %v1297
    %v1337 = vunpack.c.h.b16 %v1297
    %v1338 = vunpack.c.l.b16 %v1298
    %v1339 = vunpack.c.h.b16 %v1298
    %v1340 = vunpack.c.l.b16 %v1299
    %v1341 = vunpack.c.h.b16 %v1299
    %v1342 = vunpack.c.l.b16 %v1300
    %v1343 = vunpack.c.h.b16 %v1300
    %v1344 = vunpack.c.l.b16 %v1301
    %v1345 = vunpack.c.h.b16 %v1301
    %v1346 = vunpack.c.l.b16 %v1302
    %v1347 = vunpack.c.h.b16 %v1302
    %v1348 = vunpack.c.l.b16 %v1303
    %v1349 = vunpack.c.h.b16 %v1303
    %v1350 = vunpack.c.l.b16 %v1304
    %v1351 = vunpack.c.h.b16 %v1304
    %v1352 = vunpack.c.l.b16 %v1305
    %v1353 = vunpack.c.h.b16 %v1305
    %v1354 = vpack.c.b16 %v1324, %v1322
    %v1355 = vpack.c.b16 %v1325, %v1323
    %v1356 = vpack.c.b16 %v1328, %v1326
    %v1357 = vpack.c.b16 %v1329, %v1327
    %v1358 = vpack.c.b16 %v1332, %v1330
    %v1359 = vpack.c.b16 %v1333, %v1331
    %v1360 = vpack.c.b16 %v1336, %v1334
    %v1361 = vpack.c.b16 %v1337, %v1335
    %v1362 = vpack.c.b16 %v1340, %v1338
    %v1363 = vpack.c.b16 %v1341, %v1339
    %v1364 = vpack.c.b16 %v1344, %v1342
    %v1365 = vpack.c.b16 %v1345, %v1343
    %v1366 = vpack.c.b16 %v1348, %v1346
    %v1367 = vpack.c.b16 %v1349, %v1347
    %v1368 = vpack.c.b16 %v1352, %v1350
    %v1369 = vpack.c.b16 %v1353, %v1351
    %1386 = vmatprep.subr.bf16.mxu0 %v1355
    %1387 = vmatpush1.bf16.msra.mxu0 %v1354
    %1388 = vmatprep.subr.bf16.mxu0 %v1357
    %1389 = vmatpush1.bf16.msra.mxu0 %v1356
    %1390 = vmatprep.subr.bf16.mxu0 %v1359
    %1391 = vmatpush1.bf16.msra.mxu0 %v1358
    %1392 = vmatprep.subr.bf16.mxu0 %v1361
    %1393 = vmatpush1.bf16.msra.mxu0 %v1360
    %1394 = vmatprep.subr.bf16.mxu0 %v1363
    %1395 = vmatpush1.bf16.msra.mxu0 %v1362
    %1396 = vmatprep.subr.bf16.mxu0 %v1365
    %1397 = vmatpush1.bf16.msra.mxu0 %v1364
    %1398 = vmatprep.subr.bf16.mxu0 %v1367
    %1399 = vmatpush1.bf16.msra.mxu0 %v1366
    %1400 = vmatprep.subr.bf16.mxu0 %v1369
    %1401 = vmatpush1.bf16.msra.mxu0 %v1368
    %1402 = vmatprep.subr.bf16.mxu0 0
    %1403 = vmatpush1.bf16.msra.mxu0 0
    %1404 = vmatprep.subr.bf16.mxu0 0
    %1405 = vmatpush1.bf16.msra.mxu0 0
    %1406 = vmatprep.subr.bf16.mxu0 0
    %1407 = vmatpush1.bf16.msra.mxu0 0
    %1408 = vmatprep.subr.bf16.mxu0 0
    %1409 = vmatpush1.bf16.msra.mxu0 0
    %1410 = vmatprep.subr.bf16.mxu0 0
    %1411 = vmatpush1.bf16.msra.mxu0 0
    %1412 = vmatprep.subr.bf16.mxu0 0
    %1413 = vmatpush1.bf16.msra.mxu0 0
    %1414 = vmatprep.subr.bf16.mxu0 0
    %1415 = vmatpush1.bf16.msra.mxu0 0
    %1416 = vmatprep.subr.bf16.mxu0 0
    %1417 = vmatpush1.bf16.msra.mxu0 0
    %1418 = vmatprep.mubr.bf16.mxu0 0
    %1419 = vmatmul.mubr.bf16.gmra.mrb[0].mxu0 %v1288
    %v1420 = vpop.f32.mrb[0].mxu0
    %v1421 = vadd.f32 0.0, %v1420
    %v1422 = vpop.f32.mrb[0].mxu0
    %v1423 = vadd.f32 0.0, %v1422
    %v1424 = vpop.f32.mrb[0].mxu0
    %v1425 = vpop.f32.mrb[0].mxu0
    %1426 = vdwg.mxu0
    %v1427 = vld [vmem:[%s450] sm:$0xff]
    %v1428 = vadd.f32 %v1427, %v1421
    %v1429 = vadd.f32 %v1286, %v1423
    %v1430 = vtanh.pop %v1428
    %v1431 = vpack.c.bf16 %v1430, %v1430
    %s1432 = scalar_lea.vmem [#allocation8], 512
    %v1433 = vld [vmem:[%s1432] sm:$0xff]
    %v1434 = vld [vmem:[%s1432 + $0x8] sm:$0xff]
    %v1435 = vld [vmem:[%s1432 + $0x10] sm:$0xff]
    %v1436 = vld [vmem:[%s1432 + $0x18] sm:$0xff]
    %v1437 = vld [vmem:[%s1432 + $0x20] sm:$0xff]
    %v1438 = vld [vmem:[%s1432 + $0x28] sm:$0xff]
    %v1439 = vld [vmem:[%s1432 + $0x30] sm:$0xff]
    %v1440 = vld [vmem:[%s1432 + $0x38] sm:$0xff]
    %v1441 = vld [vmem:[%s1432 + $0x40] sm:$0xff]
    %v1442 = vld [vmem:[%s1432 + $0x48] sm:$0xff]
    %v1443 = vld [vmem:[%s1432 + $0x50] sm:$0xff]
    %v1444 = vld [vmem:[%s1432 + $0x58] sm:$0xff]
    %v1445 = vld [vmem:[%s1432 + $0x60] sm:$0xff]
    %v1446 = vld [vmem:[%s1432 + $0x68] sm:$0xff]
    %v1447 = vld [vmem:[%s1432 + $0x70] sm:$0xff]
    %v1448 = vld [vmem:[%s1432 + $0x78] sm:$0xff]
    %v1465 = vunpack.c.l.b16 %v1433
    %v1466 = vunpack.c.h.b16 %v1433
    %v1467 = vunpack.c.l.b16 %v1434
    %v1468 = vunpack.c.h.b16 %v1434
    %v1469 = vunpack.c.l.b16 %v1435
    %v1470 = vunpack.c.h.b16 %v1435
    %v1471 = vunpack.c.l.b16 %v1436
    %v1472 = vunpack.c.h.b16 %v1436
    %v1473 = vunpack.c.l.b16 %v1437
    %v1474 = vunpack.c.h.b16 %v1437
    %v1475 = vunpack.c.l.b16 %v1438
    %v1476 = vunpack.c.h.b16 %v1438
    %v1477 = vunpack.c.l.b16 %v1439
    %v1478 = vunpack.c.h.b16 %v1439
    %v1479 = vunpack.c.l.b16 %v1440
    %v1480 = vunpack.c.h.b16 %v1440
    %v1481 = vunpack.c.l.b16 %v1441
    %v1482 = vunpack.c.h.b16 %v1441
    %v1483 = vunpack.c.l.b16 %v1442
    %v1484 = vunpack.c.h.b16 %v1442
    %v1485 = vunpack.c.l.b16 %v1443
    %v1486 = vunpack.c.h.b16 %v1443
    %v1487 = vunpack.c.l.b16 %v1444
    %v1488 = vunpack.c.h.b16 %v1444
    %v1489 = vunpack.c.l.b16 %v1445
    %v1490 = vunpack.c.h.b16 %v1445
    %v1491 = vunpack.c.l.b16 %v1446
    %v1492 = vunpack.c.h.b16 %v1446
    %v1493 = vunpack.c.l.b16 %v1447
    %v1494 = vunpack.c.h.b16 %v1447
    %v1495 = vunpack.c.l.b16 %v1448
    %v1496 = vunpack.c.h.b16 %v1448
    %v1497 = vpack.c.b16 %v1467, %v1465
    %v1498 = vpack.c.b16 %v1468, %v1466
    %v1499 = vpack.c.b16 %v1471, %v1469
    %v1500 = vpack.c.b16 %v1472, %v1470
    %v1501 = vpack.c.b16 %v1475, %v1473
    %v1502 = vpack.c.b16 %v1476, %v1474
    %v1503 = vpack.c.b16 %v1479, %v1477
    %v1504 = vpack.c.b16 %v1480, %v1478
    %v1505 = vpack.c.b16 %v1483, %v1481
    %v1506 = vpack.c.b16 %v1484, %v1482
    %v1507 = vpack.c.b16 %v1487, %v1485
    %v1508 = vpack.c.b16 %v1488, %v1486
    %v1509 = vpack.c.b16 %v1491, %v1489
    %v1510 = vpack.c.b16 %v1492, %v1490
    %v1511 = vpack.c.b16 %v1495, %v1493
    %v1512 = vpack.c.b16 %v1496, %v1494
    %1529 = vmatprep.subr.bf16.mxu0 %v1498
    %1530 = vmatpush1.bf16.msra.mxu0 %v1497
    %1531 = vmatprep.subr.bf16.mxu0 %v1500
    %1532 = vmatpush1.bf16.msra.mxu0 %v1499
    %1533 = vmatprep.subr.bf16.mxu0 %v1502
    %1534 = vmatpush1.bf16.msra.mxu0 %v1501
    %1535 = vmatprep.subr.bf16.mxu0 %v1504
    %1536 = vmatpush1.bf16.msra.mxu0 %v1503
    %1537 = vmatprep.subr.bf16.mxu0 %v1506
    %1538 = vmatpush1.bf16.msra.mxu0 %v1505
    %1539 = vmatprep.subr.bf16.mxu0 %v1508
    %1540 = vmatpush1.bf16.msra.mxu0 %v1507
    %1541 = vmatprep.subr.bf16.mxu0 %v1510
    %1542 = vmatpush1.bf16.msra.mxu0 %v1509
    %1543 = vmatprep.subr.bf16.mxu0 %v1512
    %1544 = vmatpush1.bf16.msra.mxu0 %v1511
    %1545 = vmatprep.subr.bf16.mxu0 0
    %1546 = vmatpush1.bf16.msra.mxu0 0
    %1547 = vmatprep.subr.bf16.mxu0 0
    %1548 = vmatpush1.bf16.msra.mxu0 0
    %1549 = vmatprep.subr.bf16.mxu0 0
    %1550 = vmatpush1.bf16.msra.mxu0 0
    %1551 = vmatprep.subr.bf16.mxu0 0
    %1552 = vmatpush1.bf16.msra.mxu0 0
    %1553 = vmatprep.subr.bf16.mxu0 0
    %1554 = vmatpush1.bf16.msra.mxu0 0
    %1555 = vmatprep.subr.bf16.mxu0 0
    %1556 = vmatpush1.bf16.msra.mxu0 0
    %1557 = vmatprep.subr.bf16.mxu0 0
    %1558 = vmatpush1.bf16.msra.mxu0 0
    %1559 = vmatprep.subr.bf16.mxu0 0
    %1560 = vmatpush1.bf16.msra.mxu0 0
    %1561 = vmatprep.mubr.bf16.mxu0 0
    %1562 = vmatmul.mubr.bf16.gmra.mrb[0].mxu0 %v1431
    %v1563 = vpop.f32.mrb[0].mxu0
    %v1564 = vadd.f32 0.0, %v1563
    %v1565 = vpop.f32.mrb[0].mxu0
    %v1566 = vadd.f32 0.0, %v1565
    %v1567 = vpop.f32.mrb[0].mxu0
    %v1568 = vpop.f32.mrb[0].mxu0
    %1569 = vdwg.mxu0
    %v1570 = vld [vmem:[%s497] sm:$0xff]
    %v1571 = vadd.f32 %v1570, %v1564
    %v1572 = vadd.f32 %v1429, %v1566
    %v1573 = vtanh.pop %v1571
    %v1574 = vpack.c.bf16 %v1573, %v1573
    %s1575 = scalar_lea.vmem [#allocation8], 640
    %v1576 = vld [vmem:[%s1575] sm:$0xff]
    %v1577 = vld [vmem:[%s1575 + $0x8] sm:$0xff]
    %v1578 = vld [vmem:[%s1575 + $0x10] sm:$0xff]
    %v1579 = vld [vmem:[%s1575 + $0x18] sm:$0xff]
    %v1580 = vld [vmem:[%s1575 + $0x20] sm:$0xff]
    %v1581 = vld [vmem:[%s1575 + $0x28] sm:$0xff]
    %v1582 = vld [vmem:[%s1575 + $0x30] sm:$0xff]
    %v1583 = vld [vmem:[%s1575 + $0x38] sm:$0xff]
    %v1584 = vld [vmem:[%s1575 + $0x40] sm:$0xff]
    %v1585 = vld [vmem:[%s1575 + $0x48] sm:$0xff]
    %v1586 = vld [vmem:[%s1575 + $0x50] sm:$0xff]
    %v1587 = vld [vmem:[%s1575 + $0x58] sm:$0xff]
    %v1588 = vld [vmem:[%s1575 + $0x60] sm:$0xff]
    %v1589 = vld [vmem:[%s1575 + $0x68] sm:$0xff]
    %v1590 = vld [vmem:[%s1575 + $0x70] sm:$0xff]
    %v1591 = vld [vmem:[%s1575 + $0x78] sm:$0xff]
    %v1608 = vunpack.c.l.b16 %v1576
    %v1609 = vunpack.c.h.b16 %v1576
    %v1610 = vunpack.c.l.b16 %v1577
    %v1611 = vunpack.c.h.b16 %v1577
    %v1612 = vunpack.c.l.b16 %v1578
    %v1613 = vunpack.c.h.b16 %v1578
    %v1614 = vunpack.c.l.b16 %v1579
    %v1615 = vunpack.c.h.b16 %v1579
    %v1616 = vunpack.c.l.b16 %v1580
    %v1617 = vunpack.c.h.b16 %v1580
    %v1618 = vunpack.c.l.b16 %v1581
    %v1619 = vunpack.c.h.b16 %v1581
    %v1620 = vunpack.c.l.b16 %v1582
    %v1621 = vunpack.c.h.b16 %v1582
    %v1622 = vunpack.c.l.b16 %v1583
    %v1623 = vunpack.c.h.b16 %v1583
    %v1624 = vunpack.c.l.b16 %v1584
    %v1625 = vunpack.c.h.b16 %v1584
    %v1626 = vunpack.c.l.b16 %v1585
    %v1627 = vunpack.c.h.b16 %v1585
    %v1628 = vunpack.c.l.b16 %v1586
    %v1629 = vunpack.c.h.b16 %v1586
    %v1630 = vunpack.c.l.b16 %v1587
    %v1631 = vunpack.c.h.b16 %v1587
    %v1632 = vunpack.c.l.b16 %v1588
    %v1633 = vunpack.c.h.b16 %v1588
    %v1634 = vunpack.c.l.b16 %v1589
    %v1635 = vunpack.c.h.b16 %v1589
    %v1636 = vunpack.c.l.b16 %v1590
    %v1637 = vunpack.c.h.b16 %v1590
    %v1638 = vunpack.c.l.b16 %v1591
    %v1639 = vunpack.c.h.b16 %v1591
    %v1640 = vpack.c.b16 %v1610, %v1608
    %v1641 = vpack.c.b16 %v1611, %v1609
    %v1642 = vpack.c.b16 %v1614, %v1612
    %v1643 = vpack.c.b16 %v1615, %v1613
    %v1644 = vpack.c.b16 %v1618, %v1616
    %v1645 = vpack.c.b16 %v1619, %v1617
    %v1646 = vpack.c.b16 %v1622, %v1620
    %v1647 = vpack.c.b16 %v1623, %v1621
    %v1648 = vpack.c.b16 %v1626, %v1624
    %v1649 = vpack.c.b16 %v1627, %v1625
    %v1650 = vpack.c.b16 %v1630, %v1628
    %v1651 = vpack.c.b16 %v1631, %v1629
    %v1652 = vpack.c.b16 %v1634, %v1632
    %v1653 = vpack.c.b16 %v1635, %v1633
    %v1654 = vpack.c.b16 %v1638, %v1636
    %v1655 = vpack.c.b16 %v1639, %v1637
    %1672 = vmatprep.subr.bf16.mxu0 %v1641
    %1673 = vmatpush1.bf16.msra.mxu0 %v1640
    %1674 = vmatprep.subr.bf16.mxu0 %v1643
    %1675 = vmatpush1.bf16.msra.mxu0 %v1642
    %1676 = vmatprep.subr.bf16.mxu0 %v1645
    %1677 = vmatpush1.bf16.msra.mxu0 %v1644
    %1678 = vmatprep.subr.bf16.mxu0 %v1647
    %1679 = vmatpush1.bf16.msra.mxu0 %v1646
    %1680 = vmatprep.subr.bf16.mxu0 %v1649
    %1681 = vmatpush1.bf16.msra.mxu0 %v1648
    %1682 = vmatprep.subr.bf16.mxu0 %v1651
    %1683 = vmatpush1.bf16.msra.mxu0 %v1650
    %1684 = vmatprep.subr.bf16.mxu0 %v1653
    %1685 = vmatpush1.bf16.msra.mxu0 %v1652
    %1686 = vmatprep.subr.bf16.mxu0 %v1655
    %1687 = vmatpush1.bf16.msra.mxu0 %v1654
    %1688 = vmatprep.subr.bf16.mxu0 0
    %1689 = vmatpush1.bf16.msra.mxu0 0
    %1690 = vmatprep.subr.bf16.mxu0 0
    %1691 = vmatpush1.bf16.msra.mxu0 0
    %1692 = vmatprep.subr.bf16.mxu0 0
    %1693 = vmatpush1.bf16.msra.mxu0 0
    %1694 = vmatprep.subr.bf16.mxu0 0
    %1695 = vmatpush1.bf16.msra.mxu0 0
    %1696 = vmatprep.subr.bf16.mxu0 0
    %1697 = vmatpush1.bf16.msra.mxu0 0
    %1698 = vmatprep.subr.bf16.mxu0 0
    %1699 = vmatpush1.bf16.msra.mxu0 0
    %1700 = vmatprep.subr.bf16.mxu0 0
    %1701 = vmatpush1.bf16.msra.mxu0 0
    %1702 = vmatprep.subr.bf16.mxu0 0
    %1703 = vmatpush1.bf16.msra.mxu0 0
    %1704 = vmatprep.mubr.bf16.mxu0 0
    %1705 = vmatmul.mubr.bf16.gmra.mrb[0].mxu0 %v1574
    %v1706 = vpop.f32.mrb[0].mxu0
    %v1707 = vadd.f32 0.0, %v1706
    %v1708 = vpop.f32.mrb[0].mxu0
    %v1709 = vadd.f32 0.0, %v1708
    %v1710 = vpop.f32.mrb[0].mxu0
    %v1711 = vpop.f32.mrb[0].mxu0
    %1712 = vdwg.mxu0
    %v1713 = vld [vmem:[%s544] sm:$0xff]
    %v1714 = vadd.f32 %v1713, %v1707
    %v1715 = vadd.f32 %v1572, %v1709
    %v1716 = vtanh.pop %v1714
    %v1717 = vpack.c.bf16 %v1716, %v1716
    %s1718 = scalar_lea.vmem [#allocation8], 768
    %v1719 = vld [vmem:[%s1718] sm:$0xff]
    %v1720 = vld [vmem:[%s1718 + $0x8] sm:$0xff]
    %v1721 = vld [vmem:[%s1718 + $0x10] sm:$0xff]
    %v1722 = vld [vmem:[%s1718 + $0x18] sm:$0xff]
    %v1723 = vld [vmem:[%s1718 + $0x20] sm:$0xff]
    %v1724 = vld [vmem:[%s1718 + $0x28] sm:$0xff]
    %v1725 = vld [vmem:[%s1718 + $0x30] sm:$0xff]
    %v1726 = vld [vmem:[%s1718 + $0x38] sm:$0xff]
    %v1727 = vld [vmem:[%s1718 + $0x40] sm:$0xff]
    %v1728 = vld [vmem:[%s1718 + $0x48] sm:$0xff]
    %v1729 = vld [vmem:[%s1718 + $0x50] sm:$0xff]
    %v1730 = vld [vmem:[%s1718 + $0x58] sm:$0xff]
    %v1731 = vld [vmem:[%s1718 + $0x60] sm:$0xff]
    %v1732 = vld [vmem:[%s1718 + $0x68] sm:$0xff]
    %v1733 = vld [vmem:[%s1718 + $0x70] sm:$0xff]
    %v1734 = vld [vmem:[%s1718 + $0x78] sm:$0xff]
    %v1751 = vunpack.c.l.b16 %v1719
    %v1752 = vunpack.c.h.b16 %v1719
    %v1753 = vunpack.c.l.b16 %v1720
    %v1754 = vunpack.c.h.b16 %v1720
    %v1755 = vunpack.c.l.b16 %v1721
    %v1756 = vunpack.c.h.b16 %v1721
    %v1757 = vunpack.c.l.b16 %v1722
    %v1758 = vunpack.c.h.b16 %v1722
    %v1759 = vunpack.c.l.b16 %v1723
    %v1760 = vunpack.c.h.b16 %v1723
    %v1761 = vunpack.c.l.b16 %v1724
    %v1762 = vunpack.c.h.b16 %v1724
    %v1763 = vunpack.c.l.b16 %v1725
    %v1764 = vunpack.c.h.b16 %v1725
    %v1765 = vunpack.c.l.b16 %v1726
    %v1766 = vunpack.c.h.b16 %v1726
    %v1767 = vunpack.c.l.b16 %v1727
    %v1768 = vunpack.c.h.b16 %v1727
    %v1769 = vunpack.c.l.b16 %v1728
    %v1770 = vunpack.c.h.b16 %v1728
    %v1771 = vunpack.c.l.b16 %v1729
    %v1772 = vunpack.c.h.b16 %v1729
    %v1773 = vunpack.c.l.b16 %v1730
    %v1774 = vunpack.c.h.b16 %v1730
    %v1775 = vunpack.c.l.b16 %v1731
    %v1776 = vunpack.c.h.b16 %v1731
    %v1777 = vunpack.c.l.b16 %v1732
    %v1778 = vunpack.c.h.b16 %v1732
    %v1779 = vunpack.c.l.b16 %v1733
    %v1780 = vunpack.c.h.b16 %v1733
    %v1781 = vunpack.c.l.b16 %v1734
    %v1782 = vunpack.c.h.b16 %v1734
    %v1783 = vpack.c.b16 %v1753, %v1751
    %v1784 = vpack.c.b16 %v1754, %v1752
    %v1785 = vpack.c.b16 %v1757, %v1755
    %v1786 = vpack.c.b16 %v1758, %v1756
    %v1787 = vpack.c.b16 %v1761, %v1759
    %v1788 = vpack.c.b16 %v1762, %v1760
    %v1789 = vpack.c.b16 %v1765, %v1763
    %v1790 = vpack.c.b16 %v1766, %v1764
    %v1791 = vpack.c.b16 %v1769, %v1767
    %v1792 = vpack.c.b16 %v1770, %v1768
    %v1793 = vpack.c.b16 %v1773, %v1771
    %v1794 = vpack.c.b16 %v1774, %v1772
    %v1795 = vpack.c.b16 %v1777, %v1775
    %v1796 = vpack.c.b16 %v1778, %v1776
    %v1797 = vpack.c.b16 %v1781, %v1779
    %v1798 = vpack.c.b16 %v1782, %v1780
    %1815 = vmatprep.subr.bf16.mxu0 %v1784
    %1816 = vmatpush1.bf16.msra.mxu0 %v1783
    %1817 = vmatprep.subr.bf16.mxu0 %v1786
    %1818 = vmatpush1.bf16.msra.mxu0 %v1785
    %1819 = vmatprep.subr.bf16.mxu0 %v1788
    %1820 = vmatpush1.bf16.msra.mxu0 %v1787
    %1821 = vmatprep.subr.bf16.mxu0 %v1790
    %1822 = vmatpush1.bf16.msra.mxu0 %v1789
    %1823 = vmatprep.subr.bf16.mxu0 %v1792
    %1824 = vmatpush1.bf16.msra.mxu0 %v1791
    %1825 = vmatprep.subr.bf16.mxu0 %v1794
    %1826 = vmatpush1.bf16.msra.mxu0 %v1793
    %1827 = vmatprep.subr.bf16.mxu0 %v1796
    %1828 = vmatpush1.bf16.msra.mxu0 %v1795
    %1829 = vmatprep.subr.bf16.mxu0 %v1798
    %1830 = vmatpush1.bf16.msra.mxu0 %v1797
    %1831 = vmatprep.subr.bf16.mxu0 0
    %1832 = vmatpush1.bf16.msra.mxu0 0
    %1833 = vmatprep.subr.bf16.mxu0 0
    %1834 = vmatpush1.bf16.msra.mxu0 0
    %1835 = vmatprep.subr.bf16.mxu0 0
    %1836 = vmatpush1.bf16.msra.mxu0 0
    %1837 = vmatprep.subr.bf16.mxu0 0
    %1838 = vmatpush1.bf16.msra.mxu0 0
    %1839 = vmatprep.subr.bf16.mxu0 0
    %1840 = vmatpush1.bf16.msra.mxu0 0
    %1841 = vmatprep.subr.bf16.mxu0 0
    %1842 = vmatpush1.bf16.msra.mxu0 0
    %1843 = vmatprep.subr.bf16.mxu0 0
    %1844 = vmatpush1.bf16.msra.mxu0 0
    %1845 = vmatprep.subr.bf16.mxu0 0
    %1846 = vmatpush1.bf16.msra.mxu0 0
    %1847 = vmatprep.mubr.bf16.mxu0 0
    %1848 = vmatmul.mubr.bf16.gmra.mrb[0].mxu0 %v1717
    %v1849 = vpop.f32.mrb[0].mxu0
    %v1850 = vadd.f32 0.0, %v1849
    %v1851 = vpop.f32.mrb[0].mxu0
    %v1852 = vadd.f32 0.0, %v1851
    %v1853 = vpop.f32.mrb[0].mxu0
    %v1854 = vpop.f32.mrb[0].mxu0
    %1855 = vdwg.mxu0
    %v1856 = vld [vmem:[%s591] sm:$0xff]
    %v1857 = vadd.f32 %v1856, %v1850
    %v1858 = vadd.f32 %v1715, %v1852
    %v1859 = vtanh.pop %v1857
    %v1860 = vpack.c.bf16 %v1859, %v1859
    %s1861 = scalar_lea.vmem [#allocation8], 896
    %v1862 = vld [vmem:[%s1861] sm:$0xff]
    %v1863 = vld [vmem:[%s1861 + $0x8] sm:$0xff]
    %v1864 = vld [vmem:[%s1861 + $0x10] sm:$0xff]
    %v1865 = vld [vmem:[%s1861 + $0x18] sm:$0xff]
    %v1866 = vld [vmem:[%s1861 + $0x20] sm:$0xff]
    %v1867 = vld [vmem:[%s1861 + $0x28] sm:$0xff]
    %v1868 = vld [vmem:[%s1861 + $0x30] sm:$0xff]
    %v1869 = vld [vmem:[%s1861 + $0x38] sm:$0xff]
    %v1870 = vld [vmem:[%s1861 + $0x40] sm:$0xff]
    %v1871 = vld [vmem:[%s1861 + $0x48] sm:$0xff]
    %v1872 = vld [vmem:[%s1861 + $0x50] sm:$0xff]
    %v1873 = vld [vmem:[%s1861 + $0x58] sm:$0xff]
    %v1874 = vld [vmem:[%s1861 + $0x60] sm:$0xff]
    %v1875 = vld [vmem:[%s1861 + $0x68] sm:$0xff]
    %v1876 = vld [vmem:[%s1861 + $0x70] sm:$0xff]
    %v1877 = vld [vmem:[%s1861 + $0x78] sm:$0xff]
    %v1894 = vunpack.c.l.b16 %v1862
    %v1895 = vunpack.c.h.b16 %v1862
    %v1896 = vunpack.c.l.b16 %v1863
    %v1897 = vunpack.c.h.b16 %v1863
    %v1898 = vunpack.c.l.b16 %v1864
    %v1899 = vunpack.c.h.b16 %v1864
    %v1900 = vunpack.c.l.b16 %v1865
    %v1901 = vunpack.c.h.b16 %v1865
    %v1902 = vunpack.c.l.b16 %v1866
    %v1903 = vunpack.c.h.b16 %v1866
    %v1904 = vunpack.c.l.b16 %v1867
    %v1905 = vunpack.c.h.b16 %v1867
    %v1906 = vunpack.c.l.b16 %v1868
    %v1907 = vunpack.c.h.b16 %v1868
    %v1908 = vunpack.c.l.b16 %v1869
    %v1909 = vunpack.c.h.b16 %v1869
    %v1910 = vunpack.c.l.b16 %v1870
    %v1911 = vunpack.c.h.b16 %v1870
    %v1912 = vunpack.c.l.b16 %v1871
    %v1913 = vunpack.c.h.b16 %v1871
    %v1914 = vunpack.c.l.b16 %v1872
    %v1915 = vunpack.c.h.b16 %v1872
    %v1916 = vunpack.c.l.b16 %v1873
    %v1917 = vunpack.c.h.b16 %v1873
    %v1918 = vunpack.c.l.b16 %v1874
    %v1919 = vunpack.c.h.b16 %v1874
    %v1920 = vunpack.c.l.b16 %v1875
    %v1921 = vunpack.c.h.b16 %v1875
    %v1922 = vunpack.c.l.b16 %v1876
    %v1923 = vunpack.c.h.b16 %v1876
    %v1924 = vunpack.c.l.b16 %v1877
    %v1925 = vunpack.c.h.b16 %v1877
    %v1926 = vpack.c.b16 %v1896, %v1894
    %v1927 = vpack.c.b16 %v1897, %v1895
    %v1928 = vpack.c.b16 %v1900, %v1898
    %v1929 = vpack.c.b16 %v1901, %v1899
    %v1930 = vpack.c.b16 %v1904, %v1902
    %v1931 = vpack.c.b16 %v1905, %v1903
    %v1932 = vpack.c.b16 %v1908, %v1906
    %v1933 = vpack.c.b16 %v1909, %v1907
    %v1934 = vpack.c.b16 %v1912, %v1910
    %v1935 = vpack.c.b16 %v1913, %v1911
    %v1936 = vpack.c.b16 %v1916, %v1914
    %v1937 = vpack.c.b16 %v1917, %v1915
    %v1938 = vpack.c.b16 %v1920, %v1918
    %v1939 = vpack.c.b16 %v1921, %v1919
    %v1940 = vpack.c.b16 %v1924, %v1922
    %v1941 = vpack.c.b16 %v1925, %v1923
    %1958 = vmatprep.subr.bf16.mxu0 %v1927
    %1959 = vmatpush1.bf16.msra.mxu0 %v1926
    %1960 = vmatprep.subr.bf16.mxu0 %v1929
    %1961 = vmatpush1.bf16.msra.mxu0 %v1928
    %1962 = vmatprep.subr.bf16.mxu0 %v1931
    %1963 = vmatpush1.bf16.msra.mxu0 %v1930
    %1964 = vmatprep.subr.bf16.mxu0 %v1933
    %1965 = vmatpush1.bf16.msra.mxu0 %v1932
    %1966 = vmatprep.subr.bf16.mxu0 %v1935
    %1967 = vmatpush1.bf16.msra.mxu0 %v1934
    %1968 = vmatprep.subr.bf16.mxu0 %v1937
    %1969 = vmatpush1.bf16.msra.mxu0 %v1936
    %1970 = vmatprep.subr.bf16.mxu0 %v1939
    %1971 = vmatpush1.bf16.msra.mxu0 %v1938
    %1972 = vmatprep.subr.bf16.mxu0 %v1941
    %1973 = vmatpush1.bf16.msra.mxu0 %v1940
    %1974 = vmatprep.subr.bf16.mxu0 0
    %1975 = vmatpush1.bf16.msra.mxu0 0
    %1976 = vmatprep.subr.bf16.mxu0 0
    %1977 = vmatpush1.bf16.msra.mxu0 0
    %1978 = vmatprep.subr.bf16.mxu0 0
    %1979 = vmatpush1.bf16.msra.mxu0 0
    %1980 = vmatprep.subr.bf16.mxu0 0
    %1981 = vmatpush1.bf16.msra.mxu0 0
    %1982 = vmatprep.subr.bf16.mxu0 0
    %1983 = vmatpush1.bf16.msra.mxu0 0
    %1984 = vmatprep.subr.bf16.mxu0 0
    %1985 = vmatpush1.bf16.msra.mxu0 0
    %1986 = vmatprep.subr.bf16.mxu0 0
    %1987 = vmatpush1.bf16.msra.mxu0 0
    %1988 = vmatprep.subr.bf16.mxu0 0
    %1989 = vmatpush1.bf16.msra.mxu0 0
    %1990 = vmatprep.mubr.bf16.mxu0 0
    %1991 = vmatmul.mubr.bf16.gmra.mrb[0].mxu0 %v1860
    %v1992 = vpop.f32.mrb[0].mxu0
    %v1993 = vadd.f32 0.0, %v1992
    %v1994 = vpop.f32.mrb[0].mxu0
    %v1995 = vadd.f32 0.0, %v1994
    %v1996 = vpop.f32.mrb[0].mxu0
    %v1997 = vpop.f32.mrb[0].mxu0
    %1998 = vdwg.mxu0
    %v1999 = vld [vmem:[%s638] sm:$0xff]
    %v2000 = vadd.f32 %v1999, %v1993
    %v2001 = vadd.f32 %v1858, %v1995
    %v2002 = vtanh.pop %v2000
    %v2003 = vpack.c.bf16 %v2002, %v2002
    %2004 = vmatprep.subr.bf16.mxu0 0
    %2005 = vmatpush1.bf16.msra.mxu0 %v926
    %2006 = vmatprep.subr.bf16.mxu0 0
    %2007 = vmatpush1.bf16.msra.mxu0 %v928
    %2008 = vmatprep.subr.bf16.mxu0 0
    %2009 = vmatpush1.bf16.msra.mxu0 %v930
    %2010 = vmatprep.subr.bf16.mxu0 0
    %2011 = vmatpush1.bf16.msra.mxu0 %v932
    %2012 = vmatprep.subr.bf16.mxu0 0
    %2013 = vmatpush1.bf16.msra.mxu0 %v934
    %2014 = vmatprep.subr.bf16.mxu0 0
    %2015 = vmatpush1.bf16.msra.mxu0 %v936
    %2016 = vmatprep.subr.bf16.mxu0 0
    %2017 = vmatpush1.bf16.msra.mxu0 %v938
    %2018 = vmatprep.subr.bf16.mxu0 0
    %2019 = vmatpush1.bf16.msra.mxu0 %v940
    %2020 = vmatprep.subr.bf16.mxu0 0
    %2021 = vmatpush1.bf16.msra.mxu0 0
    %2022 = vmatprep.subr.bf16.mxu0 0
    %2023 = vmatpush1.bf16.msra.mxu0 0
    %2024 = vmatprep.subr.bf16.mxu0 0
    %2025 = vmatpush1.bf16.msra.mxu0 0
    %2026 = vmatprep.subr.bf16.mxu0 0
    %2027 = vmatpush1.bf16.msra.mxu0 0
    %2028 = vmatprep.subr.bf16.mxu0 0
    %2029 = vmatpush1.bf16.msra.mxu0 0
    %2030 = vmatprep.subr.bf16.mxu0 0
    %2031 = vmatpush1.bf16.msra.mxu0 0
    %2032 = vmatprep.subr.bf16.mxu0 0
    %2033 = vmatpush1.bf16.msra.mxu0 0
    %2034 = vmatprep.subr.bf16.mxu0 0
    %2035 = vmatpush1.bf16.msra.mxu0 0
    %2036 = vmatprep.mubr.bf16.mxu0 0
    %2037 = vmatmul.mubr.bf16.gmra.mrb[0].mxu0 %v2003
    %v2038 = vpop.f32.mrb[0].mxu0
    %v2039 = vadd.f32 0.0, %v2038
    %v2040 = vpop.f32.mrb[0].mxu0
    %v2041 = vpop.f32.mrb[0].mxu0
    %v2042 = vpop.f32.mrb[0].mxu0
    %2043 = vdwg.mxu0
    %v2044 = vadd.f32 %v2001, %v2039
    %v2045 = vld [vmem:[%s7] sm:$0x1]
    %v2047 = vlaneseq
    %v2048 = vshrl.u32 %v2047, 7
    %v2049 = vsub.s32 0, %v2048
    %v2050 = vrot.slane %v2045, %v2049
    %v2052 = vadd.f32 %v2044, %v2050
    %2053 = vst [vmem:[%s8] sm:$0xff] %v2052
    // Predicated region
    $region46: #{rnn_forward.1} parent=1 // pred_check
      _
    $region47: #{rnn_forward.1} parent=1 // pred_check_branch
      %2055 = sbr.rel (0) target = $region49
    $region48: #{rnn_forward.1} parent=1 // pred_region
      _
    $region49: #{rnn_forward.1} parent=1 // pred_fallthru
      _
    // Predicated region
    $region50: #{rnn_forward.1} parent=1 // pred_check
      _
    $region51: #{rnn_forward.1} parent=1 // pred_check_branch
      %2057 = sbr.rel (0) target = $region53
    $region52: #{rnn_forward.1} parent=1 // pred_region
      _
    $region53: #{rnn_forward.1} parent=1 // pred_fallthru
      _
    %2058 = vsyncpa [#allocation5], 1
    %2059 = vsyncpa [#allocation7], 1

</llo_original>
